<compile_context>
chip_gen: v5e
topology: v5e:2x2
jax: 0.10.0
libtpu: 0.0.40
codegen_flags: <defaults>
</compile_context>

<pallas_src>
import functools

import jax
import jax.numpy as jnp
from jax.experimental import pallas as pl
from jax.experimental.pallas import tpu as pltpu


def _round_up(v, m):
    return (v + m - 1) // m * m


def _fused_conv_kernel(x_ref, w1_ref, b1_ref, w2_ref, b2_ref, o_ref,
                       p1_ref, y1_ref, p2_ref, *,
                       row_stride, kh1, kw1, cin1, kh2, kw2, cin2, p1w, p2w):
    # x_ref : (1, Cin1, XPAD)        zero-padded input slab (spatial on lanes)
    # w1_ref: (Cout1, KH1*KW1*Cin1)  conv1 weight, im2col row order
    # b1_ref: (Cout1, 1)
    # w2_ref: (Cout2, KH2*KW2*Cin2)  block-diagonal grouped conv2 weight
    # b2_ref: (Cout2, 1)
    # o_ref : (1, Cout2, P2W)        output slab (row stride = W)
    # p1_ref: (KH1*KW1*Cin1, P1W)    conv1 im2col scratch
    # y1_ref: (Cout1, P1W)           conv1 output slab (VMEM-resident)
    # p2_ref: (KH2*KW2*Cin2, P2W)    conv2 im2col scratch

    # --- conv1: build im2col by stacking lane-shifted copies of the slab.
    for i in range(kh1):
        for j in range(kw1):
            t = i * kw1 + j
            off = i * row_stride + j
            p1_ref[t * cin1:(t + 1) * cin1, :] = x_ref[0, :, off:off + p1w]
    y1 = jnp.dot(w1_ref[...], p1_ref[...], preferred_element_type=jnp.float32)
    y1_ref[...] = y1 + b1_ref[...]

    # --- conv2: same trick on the VMEM-resident intermediate (never hits HBM).
    for i in range(kh2):
        for j in range(kw2):
            t = i * kw2 + j
            off = i * row_stride + j
            p2_ref[t * cin2:(t + 1) * cin2, :] = y1_ref[:, off:off + p2w]
    y2 = jnp.dot(w2_ref[...], p2_ref[...], preferred_element_type=jnp.float32)
    o_ref[0, :, :] = (y2 + b2_ref[...]).astype(o_ref.dtype)


def model_forward(x_nchw, params):
    """Reproduces Model.forward.  I/O is NCHW like PyTorch."""
    w1, b1 = params["w1"], params["b1"]
    w2, b2 = params["w2"], params["b2"]

    N, cin1, H, W = x_nchw.shape
    cout1, _, kh1, kw1 = w1.shape
    cout2, cin2_g, kh2, kw2 = w2.shape
    cin2 = cout1
    groups = cin2 // cin2_g
    cout2_g = cout2 // groups

    oh1, ow1 = H - kh1 + 1, W - kw1 + 1
    oh2, ow2 = oh1 - kh2 + 1, ow1 - kw2 + 1

    # Slab geometry: spatial index p = h*W + w on the lane axis. A kernel tap
    # (i, j) is a lane shift of i*W + j; reads for *valid* output columns never
    # cross a row boundary, so padded / junk columns never contaminate them.
    max_off1 = (kh1 - 1) * W + (kw1 - 1)
    max_off2 = (kh2 - 1) * W + (kw2 - 1)
    p2w = oh2 * W                                  # output slab width
    p1w = _round_up(p2w + max_off2, 128)           # conv1 output slab width
    xpad = max(_round_up(p1w + max_off1, 128), _round_up(H * W, 128))

    # Lane-dense, zero-padded input slab (N, Cin1, XPAD).
    x_slab = jnp.pad(x_nchw.reshape(N, cin1, H * W),
                     ((0, 0), (0, 0), (0, xpad - H * W)))

    # conv1 weight -> (Cout1, KH1*KW1*Cin1), row order (i*KW1 + j)*Cin1 + c.
    w1m = jnp.transpose(w1, (0, 2, 3, 1)).reshape(cout1, kh1 * kw1 * cin1)

    # conv2 grouped weight -> block-diagonal dense (Cout2, KH2*KW2*Cin2).
    w2full = jnp.zeros((cout2, cin2, kh2, kw2), w2.dtype)
    for g in range(groups):
        w2full = w2full.at[g * cout2_g:(g + 1) * cout2_g,
                           g * cin2_g:(g + 1) * cin2_g].set(
            w2[g * cout2_g:(g + 1) * cout2_g])
    w2m = jnp.transpose(w2full, (0, 2, 3, 1)).reshape(cout2, kh2 * kw2 * cin2)

    b1c = b1.reshape(cout1, 1).astype(jnp.float32)
    b2c = b2.reshape(cout2, 1).astype(jnp.float32)

    kernel = functools.partial(
        _fused_conv_kernel, row_stride=W, kh1=kh1, kw1=kw1, cin1=cin1,
        kh2=kh2, kw2=kw2, cin2=cin2, p1w=p1w, p2w=p2w)

    out_slab = pl.pallas_call(
        kernel,
        out_shape=jax.ShapeDtypeStruct((N, cout2, p2w), x_nchw.dtype),
        grid=(N,),
        in_specs=[
            pl.BlockSpec((1, cin1, xpad), lambda n: (n, 0, 0)),
            pl.BlockSpec((cout1, kh1 * kw1 * cin1), lambda n: (0, 0)),
            pl.BlockSpec((cout1, 1), lambda n: (0, 0)),
            pl.BlockSpec((cout2, kh2 * kw2 * cin2), lambda n: (0, 0)),
            pl.BlockSpec((cout2, 1), lambda n: (0, 0)),
        ],
        out_specs=pl.BlockSpec((1, cout2, p2w), lambda n: (n, 0, 0)),
        scratch_shapes=[
            pltpu.VMEM((kh1 * kw1 * cin1, p1w), jnp.float32),
            pltpu.VMEM((cout1, p1w), jnp.float32),
            pltpu.VMEM((kh2 * kw2 * cin2, p2w), jnp.float32),
        ],
        compiler_params=pltpu.CompilerParams(
            dimension_semantics=("parallel",)),
    )(x_slab, w1m, b1c, w2m, b2c)

    # Slab -> NCHW: column q = oh2*W + ow2; keep ow2 < OW2, drop junk columns.
    return out_slab.reshape(N, cout2, oh2, W)[:, :, :, :ow2]


def _reference_forward(x, params):
    """Pure-JAX reference (lax conv) for correctness checking."""
    y = jax.lax.conv_general_dilated(
        x, params["w1"], window_strides=(1, 1), padding="VALID",
        dimension_numbers=("NCHW", "OIHW", "NCHW"),
        precision=jax.lax.Precision.HIGHEST)
    y = y + params["b1"][None, :, None, None]
    z = jax.lax.conv_general_dilated(
        y, params["w2"], window_strides=(1, 1), padding="VALID",
        dimension_numbers=("NCHW", "OIHW", "NCHW"), feature_group_count=5,
        precision=jax.lax.Precision.HIGHEST)
    return z + params["b2"][None, :, None, None]


if __name__ == "__main__":
    key = jax.random.PRNGKey(0)
    k1, k2, k3, k4, kx = jax.random.split(key, 5)
    params = {
        "w1": 0.1 * jax.random.normal(k1, (20, 10, 5, 4), jnp.float32),
        "b1": 0.1 * jax.random.normal(k2, (20,), jnp.float32),
        "w2": 0.1 * jax.random.normal(k3, (15, 4, 4, 6), jnp.float32),
        "b2": 0.1 * jax.random.normal(k4, (15,), jnp.float32),
    }
    # Conv2d(10, ...) => 10 input channels; spatial 16x16 covers both valid
    # convolutions: (2, 10, 16, 16) -> (2, 20, 12, 13) -> (2, 15, 9, 8).
    x = jax.random.normal(kx, (2, 10, 16, 16), jnp.float32)

    out = jax.block_until_ready(model_forward(x, params))
    assert out.shape == (2, 15, 9, 8), out.shape

    ref = _reference_forward(x, params)
    max_err = float(jnp.max(jnp.abs(out - ref)))
    assert jnp.allclose(out, ref, atol=5e-3, rtol=5e-3), max_err
    print("KERNEL_OK")
</pallas_src>

<mosaic_0001>
module attributes {stable_mosaic.version = 11 : i64} {
  func.func @_fused_conv_kernel(%arg0: i32, %arg1: memref<1x10x384xf32, #tpu.memory_space<vmem>>, %arg2: memref<20x200xf32, #tpu.memory_space<vmem>>, %arg3: memref<20x1xf32, #tpu.memory_space<vmem>>, %arg4: memref<15x480xf32, #tpu.memory_space<vmem>>, %arg5: memref<15x1xf32, #tpu.memory_space<vmem>>, %arg6: memref<1x15x144xf32, #tpu.memory_space<vmem>>, %arg7: memref<200x256xf32, #tpu.memory_space<vmem>>, %arg8: memref<20x256xf32, #tpu.memory_space<vmem>>, %arg9: memref<480x144xf32, #tpu.memory_space<vmem>>) attributes {dimension_semantics = [#tpu.dimension_semantics<parallel>], iteration_bounds = array<i64: 2>, scalar_prefetch = 0 : i64, scratch_operands = 3 : i64, tpu.core_type = #tpu.core_type<tc>, window_params = [{transform_indices = @transform_0, window_bounds = array<i64: 1, 10, 384>}, {pipeline_mode = #tpu.pipeline_mode<synchronous>, transform_indices = @transform_1, window_bounds = array<i64: 20, 200>}, {pipeline_mode = #tpu.pipeline_mode<synchronous>, transform_indices = @transform_2, window_bounds = array<i64: 20, 1>}, {pipeline_mode = #tpu.pipeline_mode<synchronous>, transform_indices = @transform_3, window_bounds = array<i64: 15, 480>}, {pipeline_mode = #tpu.pipeline_mode<synchronous>, transform_indices = @transform_4, window_bounds = array<i64: 15, 1>}, {transform_indices = @transform_5, window_bounds = array<i64: 1, 15, 144>}]} {
    %c0 = arith.constant 0 : index
    %c0_0 = arith.constant 0 : index
    %c0_1 = arith.constant 0 : index
    %0 = vector.load %arg1[%c0, %c0_0, %c0_1] : memref<1x10x384xf32, #tpu.memory_space<vmem>>, vector<1x10x256xf32>
    %1 = vector.shape_cast %0 : vector<1x10x256xf32> to vector<10x256xf32>
    %c0_2 = arith.constant 0 : index
    %c0_3 = arith.constant 0 : index
    %2 = vector.load %arg7[%c0_2, %c0_3] : memref<200x256xf32, #tpu.memory_space<vmem>>, vector<10x256xf32>
    tpu.vector_store %arg7[%c0_2, %c0_3], %1 {strides = array<i32>} : memref<200x256xf32, #tpu.memory_space<vmem>>, vector<10x256xf32>,
    %c0_4 = arith.constant 0 : index
    %c0_5 = arith.constant 0 : index
    %c1 = arith.constant 1 : index
    %3 = vector.load %arg1[%c0_4, %c0_5, %c1] : memref<1x10x384xf32, #tpu.memory_space<vmem>>, vector<1x10x256xf32>
    %4 = vector.shape_cast %3 : vector<1x10x256xf32> to vector<10x256xf32>
    %c10 = arith.constant 10 : index
    %c0_6 = arith.constant 0 : index
    %5 = vector.load %arg7[%c10, %c0_6] : memref<200x256xf32, #tpu.memory_space<vmem>>, vector<10x256xf32>
    tpu.vector_store %arg7[%c10, %c0_6], %4 {strides = array<i32>} : memref<200x256xf32, #tpu.memory_space<vmem>>, vector<10x256xf32>,
    %c0_7 = arith.constant 0 : index
    %c0_8 = arith.constant 0 : index
    %c2 = arith.constant 2 : index
    %6 = vector.load %arg1[%c0_7, %c0_8, %c2] : memref<1x10x384xf32, #tpu.memory_space<vmem>>, vector<1x10x256xf32>
    %7 = vector.shape_cast %6 : vector<1x10x256xf32> to vector<10x256xf32>
    %c20 = arith.constant 20 : index
    %c0_9 = arith.constant 0 : index
    %8 = vector.load %arg7[%c20, %c0_9] : memref<200x256xf32, #tpu.memory_space<vmem>>, vector<10x256xf32>
    tpu.vector_store %arg7[%c20, %c0_9], %7 {strides = array<i32>} : memref<200x256xf32, #tpu.memory_space<vmem>>, vector<10x256xf32>,
    %c0_10 = arith.constant 0 : index
    %c0_11 = arith.constant 0 : index
    %c3 = arith.constant 3 : index
    %9 = vector.load %arg1[%c0_10, %c0_11, %c3] : memref<1x10x384xf32, #tpu.memory_space<vmem>>, vector<1x10x256xf32>
    %10 = vector.shape_cast %9 : vector<1x10x256xf32> to vector<10x256xf32>
    %c30 = arith.constant 30 : index
    %c0_12 = arith.constant 0 : index
    %11 = vector.load %arg7[%c30, %c0_12] : memref<200x256xf32, #tpu.memory_space<vmem>>, vector<10x256xf32>
    tpu.vector_store %arg7[%c30, %c0_12], %10 {strides = array<i32>} : memref<200x256xf32, #tpu.memory_space<vmem>>, vector<10x256xf32>,
    %c0_13 = arith.constant 0 : index
    %c0_14 = arith.constant 0 : index
    %c16 = arith.constant 16 : index
    %12 = vector.load %arg1[%c0_13, %c0_14, %c16] : memref<1x10x384xf32, #tpu.memory_space<vmem>>, vector<1x10x256xf32>
    %13 = vector.shape_cast %12 : vector<1x10x256xf32> to vector<10x256xf32>
    %c40 = arith.constant 40 : index
    %c0_15 = arith.constant 0 : index
    %14 = vector.load %arg7[%c40, %c0_15] : memref<200x256xf32, #tpu.memory_space<vmem>>, vector<10x256xf32>
    tpu.vector_store %arg7[%c40, %c0_15], %13 {strides = array<i32>} : memref<200x256xf32, #tpu.memory_space<vmem>>, vector<10x256xf32>,
    %c0_16 = arith.constant 0 : index
    %c0_17 = arith.constant 0 : index
    %c17 = arith.constant 17 : index
    %15 = vector.load %arg1[%c0_16, %c0_17, %c17] : memref<1x10x384xf32, #tpu.memory_space<vmem>>, vector<1x10x256xf32>
    %16 = vector.shape_cast %15 : vector<1x10x256xf32> to vector<10x256xf32>
    %c50 = arith.constant 50 : index
    %c0_18 = arith.constant 0 : index
    %17 = vector.load %arg7[%c50, %c0_18] : memref<200x256xf32, #tpu.memory_space<vmem>>, vector<10x256xf32>
    tpu.vector_store %arg7[%c50, %c0_18], %16 {strides = array<i32>} : memref<200x256xf32, #tpu.memory_space<vmem>>, vector<10x256xf32>,
    %c0_19 = arith.constant 0 : index
    %c0_20 = arith.constant 0 : index
    %c18 = arith.constant 18 : index
    %18 = vector.load %arg1[%c0_19, %c0_20, %c18] : memref<1x10x384xf32, #tpu.memory_space<vmem>>, vector<1x10x256xf32>
    %19 = vector.shape_cast %18 : vector<1x10x256xf32> to vector<10x256xf32>
    %c60 = arith.constant 60 : index
    %c0_21 = arith.constant 0 : index
    %20 = vector.load %arg7[%c60, %c0_21] : memref<200x256xf32, #tpu.memory_space<vmem>>, vector<10x256xf32>
    tpu.vector_store %arg7[%c60, %c0_21], %19 {strides = array<i32>} : memref<200x256xf32, #tpu.memory_space<vmem>>, vector<10x256xf32>,
    %c0_22 = arith.constant 0 : index
    %c0_23 = arith.constant 0 : index
    %c19 = arith.constant 19 : index
    %21 = vector.load %arg1[%c0_22, %c0_23, %c19] : memref<1x10x384xf32, #tpu.memory_space<vmem>>, vector<1x10x256xf32>
    %22 = vector.shape_cast %21 : vector<1x10x256xf32> to vector<10x256xf32>
    %c70 = arith.constant 70 : index
    %c0_24 = arith.constant 0 : index
    %23 = vector.load %arg7[%c70, %c0_24] : memref<200x256xf32, #tpu.memory_space<vmem>>, vector<10x256xf32>
    tpu.vector_store %arg7[%c70, %c0_24], %22 {strides = array<i32>} : memref<200x256xf32, #tpu.memory_space<vmem>>, vector<10x256xf32>,
    %c0_25 = arith.constant 0 : index
    %c0_26 = arith.constant 0 : index
    %c32 = arith.constant 32 : index
    %24 = vector.load %arg1[%c0_25, %c0_26, %c32] : memref<1x10x384xf32, #tpu.memory_space<vmem>>, vector<1x10x256xf32>
    %25 = vector.shape_cast %24 : vector<1x10x256xf32> to vector<10x256xf32>
    %c80 = arith.constant 80 : index
    %c0_27 = arith.constant 0 : index
    %26 = vector.load %arg7[%c80, %c0_27] : memref<200x256xf32, #tpu.memory_space<vmem>>, vector<10x256xf32>
    tpu.vector_store %arg7[%c80, %c0_27], %25 {strides = array<i32>} : memref<200x256xf32, #tpu.memory_space<vmem>>, vector<10x256xf32>,
    %c0_28 = arith.constant 0 : index
    %c0_29 = arith.constant 0 : index
    %c33 = arith.constant 33 : index
    %27 = vector.load %arg1[%c0_28, %c0_29, %c33] : memref<1x10x384xf32, #tpu.memory_space<vmem>>, vector<1x10x256xf32>
    %28 = vector.shape_cast %27 : vector<1x10x256xf32> to vector<10x256xf32>
    %c90 = arith.constant 90 : index
    %c0_30 = arith.constant 0 : index
    %29 = vector.load %arg7[%c90, %c0_30] : memref<200x256xf32, #tpu.memory_space<vmem>>, vector<10x256xf32>
    tpu.vector_store %arg7[%c90, %c0_30], %28 {strides = array<i32>} : memref<200x256xf32, #tpu.memory_space<vmem>>, vector<10x256xf32>,
    %c0_31 = arith.constant 0 : index
    %c0_32 = arith.constant 0 : index
    %c34 = arith.constant 34 : index
    %30 = vector.load %arg1[%c0_31, %c0_32, %c34] : memref<1x10x384xf32, #tpu.memory_space<vmem>>, vector<1x10x256xf32>
    %31 = vector.shape_cast %30 : vector<1x10x256xf32> to vector<10x256xf32>
    %c100 = arith.constant 100 : index
    %c0_33 = arith.constant 0 : index
    %32 = vector.load %arg7[%c100, %c0_33] : memref<200x256xf32, #tpu.memory_space<vmem>>, vector<10x256xf32>
    tpu.vector_store %arg7[%c100, %c0_33], %31 {strides = array<i32>} : memref<200x256xf32, #tpu.memory_space<vmem>>, vector<10x256xf32>,
    %c0_34 = arith.constant 0 : index
    %c0_35 = arith.constant 0 : index
    %c35 = arith.constant 35 : index
    %33 = vector.load %arg1[%c0_34, %c0_35, %c35] : memref<1x10x384xf32, #tpu.memory_space<vmem>>, vector<1x10x256xf32>
    %34 = vector.shape_cast %33 : vector<1x10x256xf32> to vector<10x256xf32>
    %c110 = arith.constant 110 : index
    %c0_36 = arith.constant 0 : index
    %35 = vector.load %arg7[%c110, %c0_36] : memref<200x256xf32, #tpu.memory_space<vmem>>, vector<10x256xf32>
    tpu.vector_store %arg7[%c110, %c0_36], %34 {strides = array<i32>} : memref<200x256xf32, #tpu.memory_space<vmem>>, vector<10x256xf32>,
    %c0_37 = arith.constant 0 : index
    %c0_38 = arith.constant 0 : index
    %c48 = arith.constant 48 : index
    %36 = vector.load %arg1[%c0_37, %c0_38, %c48] : memref<1x10x384xf32, #tpu.memory_space<vmem>>, vector<1x10x256xf32>
    %37 = vector.shape_cast %36 : vector<1x10x256xf32> to vector<10x256xf32>
    %c120 = arith.constant 120 : index
    %c0_39 = arith.constant 0 : index
    %38 = vector.load %arg7[%c120, %c0_39] : memref<200x256xf32, #tpu.memory_space<vmem>>, vector<10x256xf32>
    tpu.vector_store %arg7[%c120, %c0_39], %37 {strides = array<i32>} : memref<200x256xf32, #tpu.memory_space<vmem>>, vector<10x256xf32>,
    %c0_40 = arith.constant 0 : index
    %c0_41 = arith.constant 0 : index
    %c49 = arith.constant 49 : index
    %39 = vector.load %arg1[%c0_40, %c0_41, %c49] : memref<1x10x384xf32, #tpu.memory_space<vmem>>, vector<1x10x256xf32>
    %40 = vector.shape_cast %39 : vector<1x10x256xf32> to vector<10x256xf32>
    %c130 = arith.constant 130 : index
    %c0_42 = arith.constant 0 : index
    %41 = vector.load %arg7[%c130, %c0_42] : memref<200x256xf32, #tpu.memory_space<vmem>>, vector<10x256xf32>
    tpu.vector_store %arg7[%c130, %c0_42], %40 {strides = array<i32>} : memref<200x256xf32, #tpu.memory_space<vmem>>, vector<10x256xf32>,
    %c0_43 = arith.constant 0 : index
    %c0_44 = arith.constant 0 : index
    %c50_45 = arith.constant 50 : index
    %42 = vector.load %arg1[%c0_43, %c0_44, %c50_45] : memref<1x10x384xf32, #tpu.memory_space<vmem>>, vector<1x10x256xf32>
    %43 = vector.shape_cast %42 : vector<1x10x256xf32> to vector<10x256xf32>
    %c140 = arith.constant 140 : index
    %c0_46 = arith.constant 0 : index
    %44 = vector.load %arg7[%c140, %c0_46] : memref<200x256xf32, #tpu.memory_space<vmem>>, vector<10x256xf32>
    tpu.vector_store %arg7[%c140, %c0_46], %43 {strides = array<i32>} : memref<200x256xf32, #tpu.memory_space<vmem>>, vector<10x256xf32>,
    %c0_47 = arith.constant 0 : index
    %c0_48 = arith.constant 0 : index
    %c51 = arith.constant 51 : index
    %45 = vector.load %arg1[%c0_47, %c0_48, %c51] : memref<1x10x384xf32, #tpu.memory_space<vmem>>, vector<1x10x256xf32>
    %46 = vector.shape_cast %45 : vector<1x10x256xf32> to vector<10x256xf32>
    %c150 = arith.constant 150 : index
    %c0_49 = arith.constant 0 : index
    %47 = vector.load %arg7[%c150, %c0_49] : memref<200x256xf32, #tpu.memory_space<vmem>>, vector<10x256xf32>
    tpu.vector_store %arg7[%c150, %c0_49], %46 {strides = array<i32>} : memref<200x256xf32, #tpu.memory_space<vmem>>, vector<10x256xf32>,
    %c0_50 = arith.constant 0 : index
    %c0_51 = arith.constant 0 : index
    %c64 = arith.constant 64 : index
    %48 = vector.load %arg1[%c0_50, %c0_51, %c64] : memref<1x10x384xf32, #tpu.memory_space<vmem>>, vector<1x10x256xf32>
    %49 = vector.shape_cast %48 : vector<1x10x256xf32> to vector<10x256xf32>
    %c160 = arith.constant 160 : index
    %c0_52 = arith.constant 0 : index
    %50 = vector.load %arg7[%c160, %c0_52] : memref<200x256xf32, #tpu.memory_space<vmem>>, vector<10x256xf32>
    tpu.vector_store %arg7[%c160, %c0_52], %49 {strides = array<i32>} : memref<200x256xf32, #tpu.memory_space<vmem>>, vector<10x256xf32>,
    %c0_53 = arith.constant 0 : index
    %c0_54 = arith.constant 0 : index
    %c65 = arith.constant 65 : index
    %51 = vector.load %arg1[%c0_53, %c0_54, %c65] : memref<1x10x384xf32, #tpu.memory_space<vmem>>, vector<1x10x256xf32>
    %52 = vector.shape_cast %51 : vector<1x10x256xf32> to vector<10x256xf32>
    %c170 = arith.constant 170 : index
    %c0_55 = arith.constant 0 : index
    %53 = vector.load %arg7[%c170, %c0_55] : memref<200x256xf32, #tpu.memory_space<vmem>>, vector<10x256xf32>
    tpu.vector_store %arg7[%c170, %c0_55], %52 {strides = array<i32>} : memref<200x256xf32, #tpu.memory_space<vmem>>, vector<10x256xf32>,
    %c0_56 = arith.constant 0 : index
    %c0_57 = arith.constant 0 : index
    %c66 = arith.constant 66 : index
    %54 = vector.load %arg1[%c0_56, %c0_57, %c66] : memref<1x10x384xf32, #tpu.memory_space<vmem>>, vector<1x10x256xf32>
    %55 = vector.shape_cast %54 : vector<1x10x256xf32> to vector<10x256xf32>
    %c180 = arith.constant 180 : index
    %c0_58 = arith.constant 0 : index
    %56 = vector.load %arg7[%c180, %c0_58] : memref<200x256xf32, #tpu.memory_space<vmem>>, vector<10x256xf32>
    tpu.vector_store %arg7[%c180, %c0_58], %55 {strides = array<i32>} : memref<200x256xf32, #tpu.memory_space<vmem>>, vector<10x256xf32>,
    %c0_59 = arith.constant 0 : index
    %c0_60 = arith.constant 0 : index
    %c67 = arith.constant 67 : index
    %57 = vector.load %arg1[%c0_59, %c0_60, %c67] : memref<1x10x384xf32, #tpu.memory_space<vmem>>, vector<1x10x256xf32>
    %58 = vector.shape_cast %57 : vector<1x10x256xf32> to vector<10x256xf32>
    %c190 = arith.constant 190 : index
    %c0_61 = arith.constant 0 : index
    %59 = vector.load %arg7[%c190, %c0_61] : memref<200x256xf32, #tpu.memory_space<vmem>>, vector<10x256xf32>
    tpu.vector_store %arg7[%c190, %c0_61], %58 {strides = array<i32>} : memref<200x256xf32, #tpu.memory_space<vmem>>, vector<10x256xf32>,
    %c0_62 = arith.constant 0 : index
    %c0_63 = arith.constant 0 : index
    %60 = vector.load %arg2[%c0_62, %c0_63] : memref<20x200xf32, #tpu.memory_space<vmem>>, vector<20x200xf32>
    %c0_64 = arith.constant 0 : index
    %c0_65 = arith.constant 0 : index
    %61 = vector.load %arg7[%c0_64, %c0_65] : memref<200x256xf32, #tpu.memory_space<vmem>>, vector<200x256xf32>
    %cst = arith.constant dense<0.000000e+00> : vector<20x256xf32>
    %62 = tpu.matmul %60, %61, %cst {dimension_numbers = #tpu.dot_dimension_numbers<[1], [0], [0], [1], [0, 0, 1, 1], [], []>} : vector<20x200xf32>, vector<200x256xf32>, vector<20x256xf32> -> vector<20x256xf32>
    %c0_66 = arith.constant 0 : index
    %c0_67 = arith.constant 0 : index
    %63 = vector.load %arg3[%c0_66, %c0_67] : memref<20x1xf32, #tpu.memory_space<vmem>>, vector<20x1xf32>
    %64 = vector.broadcast %63 : vector<20x1xf32> to vector<20x256xf32>
    %65 = arith.addf %62, %64 : vector<20x256xf32>
    %c0_68 = arith.constant 0 : index
    %c0_69 = arith.constant 0 : index
    %66 = vector.load %arg8[%c0_68, %c0_69] : memref<20x256xf32, #tpu.memory_space<vmem>>, vector<20x256xf32>
    tpu.vector_store %arg8[%c0_68, %c0_69], %65 {strides = array<i32>} : memref<20x256xf32, #tpu.memory_space<vmem>>, vector<20x256xf32>,
    %c0_70 = arith.constant 0 : index
    %c0_71 = arith.constant 0 : index
    %67 = vector.load %arg8[%c0_70, %c0_71] : memref<20x256xf32, #tpu.memory_space<vmem>>, vector<20x144xf32>
    %c0_72 = arith.constant 0 : index
    %c0_73 = arith.constant 0 : index
    %68 = vector.load %arg9[%c0_72, %c0_73] : memref<480x144xf32, #tpu.memory_space<vmem>>, vector<20x144xf32>
    tpu.vector_store %arg9[%c0_72, %c0_73], %67 {strides = array<i32>} : memref<480x144xf32, #tpu.memory_space<vmem>>, vector<20x144xf32>,
    %c0_74 = arith.constant 0 : index
    %c1_75 = arith.constant 1 : index
    %69 = vector.load %arg8[%c0_74, %c1_75] : memref<20x256xf32, #tpu.memory_space<vmem>>, vector<20x144xf32>
    %c20_76 = arith.constant 20 : index
    %c0_77 = arith.constant 0 : index
    %70 = vector.load %arg9[%c20_76, %c0_77] : memref<480x144xf32, #tpu.memory_space<vmem>>, vector<20x144xf32>
    tpu.vector_store %arg9[%c20_76, %c0_77], %69 {strides = array<i32>} : memref<480x144xf32, #tpu.memory_space<vmem>>, vector<20x144xf32>,
    %c0_78 = arith.constant 0 : index
    %c2_79 = arith.constant 2 : index
    %71 = vector.load %arg8[%c0_78, %c2_79] : memref<20x256xf32, #tpu.memory_space<vmem>>, vector<20x144xf32>
    %c40_80 = arith.constant 40 : index
    %c0_81 = arith.constant 0 : index
    %72 = vector.load %arg9[%c40_80, %c0_81] : memref<480x144xf32, #tpu.memory_space<vmem>>, vector<20x144xf32>
    tpu.vector_store %arg9[%c40_80, %c0_81], %71 {strides = array<i32>} : memref<480x144xf32, #tpu.memory_space<vmem>>, vector<20x144xf32>,
    %c0_82 = arith.constant 0 : index
    %c3_83 = arith.constant 3 : index
    %73 = vector.load %arg8[%c0_82, %c3_83] : memref<20x256xf32, #tpu.memory_space<vmem>>, vector<20x144xf32>
    %c60_84 = arith.constant 60 : index
    %c0_85 = arith.constant 0 : index
    %74 = vector.load %arg9[%c60_84, %c0_85] : memref<480x144xf32, #tpu.memory_space<vmem>>, vector<20x144xf32>
    tpu.vector_store %arg9[%c60_84, %c0_85], %73 {strides = array<i32>} : memref<480x144xf32, #tpu.memory_space<vmem>>, vector<20x144xf32>,
    %c0_86 = arith.constant 0 : index
    %c4 = arith.constant 4 : index
    %75 = vector.load %arg8[%c0_86, %c4] : memref<20x256xf32, #tpu.memory_space<vmem>>, vector<20x144xf32>
    %c80_87 = arith.constant 80 : index
    %c0_88 = arith.constant 0 : index
    %76 = vector.load %arg9[%c80_87, %c0_88] : memref<480x144xf32, #tpu.memory_space<vmem>>, vector<20x144xf32>
    tpu.vector_store %arg9[%c80_87, %c0_88], %75 {strides = array<i32>} : memref<480x144xf32, #tpu.memory_space<vmem>>, vector<20x144xf32>,
    %c0_89 = arith.constant 0 : index
    %c5 = arith.constant 5 : index
    %77 = vector.load %arg8[%c0_89, %c5] : memref<20x256xf32, #tpu.memory_space<vmem>>, vector<20x144xf32>
    %c100_90 = arith.constant 100 : index
    %c0_91 = arith.constant 0 : index
    %78 = vector.load %arg9[%c100_90, %c0_91] : memref<480x144xf32, #tpu.memory_space<vmem>>, vector<20x144xf32>
    tpu.vector_store %arg9[%c100_90, %c0_91], %77 {strides = array<i32>} : memref<480x144xf32, #tpu.memory_space<vmem>>, vector<20x144xf32>,
    %c0_92 = arith.constant 0 : index
    %c16_93 = arith.constant 16 : index
    %79 = vector.load %arg8[%c0_92, %c16_93] : memref<20x256xf32, #tpu.memory_space<vmem>>, vector<20x144xf32>
    %c120_94 = arith.constant 120 : index
    %c0_95 = arith.constant 0 : index
    %80 = vector.load %arg9[%c120_94, %c0_95] : memref<480x144xf32, #tpu.memory_space<vmem>>, vector<20x144xf32>
    tpu.vector_store %arg9[%c120_94, %c0_95], %79 {strides = array<i32>} : memref<480x144xf32, #tpu.memory_space<vmem>>, vector<20x144xf32>,
    %c0_96 = arith.constant 0 : index
    %c17_97 = arith.constant 17 : index
    %81 = vector.load %arg8[%c0_96, %c17_97] : memref<20x256xf32, #tpu.memory_space<vmem>>, vector<20x144xf32>
    %c140_98 = arith.constant 140 : index
    %c0_99 = arith.constant 0 : index
    %82 = vector.load %arg9[%c140_98, %c0_99] : memref<480x144xf32, #tpu.memory_space<vmem>>, vector<20x144xf32>
    tpu.vector_store %arg9[%c140_98, %c0_99], %81 {strides = array<i32>} : memref<480x144xf32, #tpu.memory_space<vmem>>, vector<20x144xf32>,
    %c0_100 = arith.constant 0 : index
    %c18_101 = arith.constant 18 : index
    %83 = vector.load %arg8[%c0_100, %c18_101] : memref<20x256xf32, #tpu.memory_space<vmem>>, vector<20x144xf32>
    %c160_102 = arith.constant 160 : index
    %c0_103 = arith.constant 0 : index
    %84 = vector.load %arg9[%c160_102, %c0_103] : memref<480x144xf32, #tpu.memory_space<vmem>>, vector<20x144xf32>
    tpu.vector_store %arg9[%c160_102, %c0_103], %83 {strides = array<i32>} : memref<480x144xf32, #tpu.memory_space<vmem>>, vector<20x144xf32>,
    %c0_104 = arith.constant 0 : index
    %c19_105 = arith.constant 19 : index
    %85 = vector.load %arg8[%c0_104, %c19_105] : memref<20x256xf32, #tpu.memory_space<vmem>>, vector<20x144xf32>
    %c180_106 = arith.constant 180 : index
    %c0_107 = arith.constant 0 : index
    %86 = vector.load %arg9[%c180_106, %c0_107] : memref<480x144xf32, #tpu.memory_space<vmem>>, vector<20x144xf32>
    tpu.vector_store %arg9[%c180_106, %c0_107], %85 {strides = array<i32>} : memref<480x144xf32, #tpu.memory_space<vmem>>, vector<20x144xf32>,
    %c0_108 = arith.constant 0 : index
    %c20_109 = arith.constant 20 : index
    %87 = vector.load %arg8[%c0_108, %c20_109] : memref<20x256xf32, #tpu.memory_space<vmem>>, vector<20x144xf32>
    %c200 = arith.constant 200 : index
    %c0_110 = arith.constant 0 : index
    %88 = vector.load %arg9[%c200, %c0_110] : memref<480x144xf32, #tpu.memory_space<vmem>>, vector<20x144xf32>
    tpu.vector_store %arg9[%c200, %c0_110], %87 {strides = array<i32>} : memref<480x144xf32, #tpu.memory_space<vmem>>, vector<20x144xf32>,
    %c0_111 = arith.constant 0 : index
    %c21 = arith.constant 21 : index
    %89 = vector.load %arg8[%c0_111, %c21] : memref<20x256xf32, #tpu.memory_space<vmem>>, vector<20x144xf32>
    %c220 = arith.constant 220 : index
    %c0_112 = arith.constant 0 : index
    %90 = vector.load %arg9[%c220, %c0_112] : memref<480x144xf32, #tpu.memory_space<vmem>>, vector<20x144xf32>
    tpu.vector_store %arg9[%c220, %c0_112], %89 {strides = array<i32>} : memref<480x144xf32, #tpu.memory_space<vmem>>, vector<20x144xf32>,
    %c0_113 = arith.constant 0 : index
    %c32_114 = arith.constant 32 : index
    %91 = vector.load %arg8[%c0_113, %c32_114] : memref<20x256xf32, #tpu.memory_space<vmem>>, vector<20x144xf32>
    %c240 = arith.constant 240 : index
    %c0_115 = arith.constant 0 : index
    %92 = vector.load %arg9[%c240, %c0_115] : memref<480x144xf32, #tpu.memory_space<vmem>>, vector<20x144xf32>
    tpu.vector_store %arg9[%c240, %c0_115], %91 {strides = array<i32>} : memref<480x144xf32, #tpu.memory_space<vmem>>, vector<20x144xf32>,
    %c0_116 = arith.constant 0 : index
    %c33_117 = arith.constant 33 : index
    %93 = vector.load %arg8[%c0_116, %c33_117] : memref<20x256xf32, #tpu.memory_space<vmem>>, vector<20x144xf32>
    %c260 = arith.constant 260 : index
    %c0_118 = arith.constant 0 : index
    %94 = vector.load %arg9[%c260, %c0_118] : memref<480x144xf32, #tpu.memory_space<vmem>>, vector<20x144xf32>
    tpu.vector_store %arg9[%c260, %c0_118], %93 {strides = array<i32>} : memref<480x144xf32, #tpu.memory_space<vmem>>, vector<20x144xf32>,
    %c0_119 = arith.constant 0 : index
    %c34_120 = arith.constant 34 : index
    %95 = vector.load %arg8[%c0_119, %c34_120] : memref<20x256xf32, #tpu.memory_space<vmem>>, vector<20x144xf32>
    %c280 = arith.constant 280 : index
    %c0_121 = arith.constant 0 : index
    %96 = vector.load %arg9[%c280, %c0_121] : memref<480x144xf32, #tpu.memory_space<vmem>>, vector<20x144xf32>
    tpu.vector_store %arg9[%c280, %c0_121], %95 {strides = array<i32>} : memref<480x144xf32, #tpu.memory_space<vmem>>, vector<20x144xf32>,
    %c0_122 = arith.constant 0 : index
    %c35_123 = arith.constant 35 : index
    %97 = vector.load %arg8[%c0_122, %c35_123] : memref<20x256xf32, #tpu.memory_space<vmem>>, vector<20x144xf32>
    %c300 = arith.constant 300 : index
    %c0_124 = arith.constant 0 : index
    %98 = vector.load %arg9[%c300, %c0_124] : memref<480x144xf32, #tpu.memory_space<vmem>>, vector<20x144xf32>
    tpu.vector_store %arg9[%c300, %c0_124], %97 {strides = array<i32>} : memref<480x144xf32, #tpu.memory_space<vmem>>, vector<20x144xf32>,
    %c0_125 = arith.constant 0 : index
    %c36 = arith.constant 36 : index
    %99 = vector.load %arg8[%c0_125, %c36] : memref<20x256xf32, #tpu.memory_space<vmem>>, vector<20x144xf32>
    %c320 = arith.constant 320 : index
    %c0_126 = arith.constant 0 : index
    %100 = vector.load %arg9[%c320, %c0_126] : memref<480x144xf32, #tpu.memory_space<vmem>>, vector<20x144xf32>
    tpu.vector_store %arg9[%c320, %c0_126], %99 {strides = array<i32>} : memref<480x144xf32, #tpu.memory_space<vmem>>, vector<20x144xf32>,
    %c0_127 = arith.constant 0 : index
    %c37 = arith.constant 37 : index
    %101 = vector.load %arg8[%c0_127, %c37] : memref<20x256xf32, #tpu.memory_space<vmem>>, vector<20x144xf32>
    %c340 = arith.constant 340 : index
    %c0_128 = arith.constant 0 : index
    %102 = vector.load %arg9[%c340, %c0_128] : memref<480x144xf32, #tpu.memory_space<vmem>>, vector<20x144xf32>
    tpu.vector_store %arg9[%c340, %c0_128], %101 {strides = array<i32>} : memref<480x144xf32, #tpu.memory_space<vmem>>, vector<20x144xf32>,
    %c0_129 = arith.constant 0 : index
    %c48_130 = arith.constant 48 : index
    %103 = vector.load %arg8[%c0_129, %c48_130] : memref<20x256xf32, #tpu.memory_space<vmem>>, vector<20x144xf32>
    %c360 = arith.constant 360 : index
    %c0_131 = arith.constant 0 : index
    %104 = vector.load %arg9[%c360, %c0_131] : memref<480x144xf32, #tpu.memory_space<vmem>>, vector<20x144xf32>
    tpu.vector_store %arg9[%c360, %c0_131], %103 {strides = array<i32>} : memref<480x144xf32, #tpu.memory_space<vmem>>, vector<20x144xf32>,
    %c0_132 = arith.constant 0 : index
    %c49_133 = arith.constant 49 : index
    %105 = vector.load %arg8[%c0_132, %c49_133] : memref<20x256xf32, #tpu.memory_space<vmem>>, vector<20x144xf32>
    %c380 = arith.constant 380 : index
    %c0_134 = arith.constant 0 : index
    %106 = vector.load %arg9[%c380, %c0_134] : memref<480x144xf32, #tpu.memory_space<vmem>>, vector<20x144xf32>
    tpu.vector_store %arg9[%c380, %c0_134], %105 {strides = array<i32>} : memref<480x144xf32, #tpu.memory_space<vmem>>, vector<20x144xf32>,
    %c0_135 = arith.constant 0 : index
    %c50_136 = arith.constant 50 : index
    %107 = vector.load %arg8[%c0_135, %c50_136] : memref<20x256xf32, #tpu.memory_space<vmem>>, vector<20x144xf32>
    %c400 = arith.constant 400 : index
    %c0_137 = arith.constant 0 : index
    %108 = vector.load %arg9[%c400, %c0_137] : memref<480x144xf32, #tpu.memory_space<vmem>>, vector<20x144xf32>
    tpu.vector_store %arg9[%c400, %c0_137], %107 {strides = array<i32>} : memref<480x144xf32, #tpu.memory_space<vmem>>, vector<20x144xf32>,
    %c0_138 = arith.constant 0 : index
    %c51_139 = arith.constant 51 : index
    %109 = vector.load %arg8[%c0_138, %c51_139] : memref<20x256xf32, #tpu.memory_space<vmem>>, vector<20x144xf32>
    %c420 = arith.constant 420 : index
    %c0_140 = arith.constant 0 : index
    %110 = vector.load %arg9[%c420, %c0_140] : memref<480x144xf32, #tpu.memory_space<vmem>>, vector<20x144xf32>
    tpu.vector_store %arg9[%c420, %c0_140], %109 {strides = array<i32>} : memref<480x144xf32, #tpu.memory_space<vmem>>, vector<20x144xf32>,
    %c0_141 = arith.constant 0 : index
    %c52 = arith.constant 52 : index
    %111 = vector.load %arg8[%c0_141, %c52] : memref<20x256xf32, #tpu.memory_space<vmem>>, vector<20x144xf32>
    %c440 = arith.constant 440 : index
    %c0_142 = arith.constant 0 : index
    %112 = vector.load %arg9[%c440, %c0_142] : memref<480x144xf32, #tpu.memory_space<vmem>>, vector<20x144xf32>
    tpu.vector_store %arg9[%c440, %c0_142], %111 {strides = array<i32>} : memref<480x144xf32, #tpu.memory_space<vmem>>, vector<20x144xf32>,
    %c0_143 = arith.constant 0 : index
    %c53 = arith.constant 53 : index
    %113 = vector.load %arg8[%c0_143, %c53] : memref<20x256xf32, #tpu.memory_space<vmem>>, vector<20x144xf32>
    %c460 = arith.constant 460 : index
    %c0_144 = arith.constant 0 : index
    %114 = vector.load %arg9[%c460, %c0_144] : memref<480x144xf32, #tpu.memory_space<vmem>>, vector<20x144xf32>
    tpu.vector_store %arg9[%c460, %c0_144], %113 {strides = array<i32>} : memref<480x144xf32, #tpu.memory_space<vmem>>, vector<20x144xf32>,
    %c0_145 = arith.constant 0 : index
    %c0_146 = arith.constant 0 : index
    %115 = vector.load %arg4[%c0_145, %c0_146] : memref<15x480xf32, #tpu.memory_space<vmem>>, vector<15x480xf32>
    %c0_147 = arith.constant 0 : index
    %c0_148 = arith.constant 0 : index
    %116 = vector.load %arg9[%c0_147, %c0_148] : memref<480x144xf32, #tpu.memory_space<vmem>>, vector<480x144xf32>
    %cst_149 = arith.constant dense<0.000000e+00> : vector<15x144xf32>
    %117 = tpu.matmul %115, %116, %cst_149 {dimension_numbers = #tpu.dot_dimension_numbers<[1], [0], [0], [1], [0, 0, 1, 1], [], []>} : vector<15x480xf32>, vector<480x144xf32>, vector<15x144xf32> -> vector<15x144xf32>
    %c0_150 = arith.constant 0 : index
    %c0_151 = arith.constant 0 : index
    %118 = vector.load %arg5[%c0_150, %c0_151] : memref<15x1xf32, #tpu.memory_space<vmem>>, vector<15x1xf32>
    %119 = vector.broadcast %118 : vector<15x1xf32> to vector<15x144xf32>
    %120 = arith.addf %117, %119 : vector<15x144xf32>
    %c0_152 = arith.constant 0 : index
    %c0_153 = arith.constant 0 : index
    %c0_154 = arith.constant 0 : index
    %121 = vector.load %arg6[%c0_152, %c0_153, %c0_154] : memref<1x15x144xf32, #tpu.memory_space<vmem>>, vector<1x15x144xf32>
    %122 = vector.shape_cast %121 : vector<1x15x144xf32> to vector<15x144xf32>
    %123 = vector.shape_cast %120 : vector<15x144xf32> to vector<1x15x144xf32>
    tpu.vector_store %arg6[%c0_152, %c0_153, %c0_154], %123 {strides = array<i32>} : memref<1x15x144xf32, #tpu.memory_space<vmem>>, vector<1x15x144xf32>,
    return
  }
  func.func @transform_0(%arg0: i32) -> (i32, i32, i32) {
    %c0_i32 = arith.constant 0 : i32
    %c0_i32_0 = arith.constant 0 : i32
    %c0_i32_1 = arith.constant 0 : i32
    return %arg0, %c0_i32, %c0_i32_0 : i32, i32, i32
  }
  func.func @transform_1(%arg0: i32) -> (i32, i32) {
    %c0_i32 = arith.constant 0 : i32
    %c0_i32_0 = arith.constant 0 : i32
    %c0_i32_1 = arith.constant 0 : i32
    return %c0_i32, %c0_i32_0 : i32, i32
  }
  func.func @transform_2(%arg0: i32) -> (i32, i32) {
    %c0_i32 = arith.constant 0 : i32
    %c0_i32_0 = arith.constant 0 : i32
    %c0_i32_1 = arith.constant 0 : i32
    return %c0_i32, %c0_i32_0 : i32, i32
  }
  func.func @transform_3(%arg0: i32) -> (i32, i32) {
    %c0_i32 = arith.constant 0 : i32
    %c0_i32_0 = arith.constant 0 : i32
    %c0_i32_1 = arith.constant 0 : i32
    return %c0_i32, %c0_i32_0 : i32, i32
  }
  func.func @transform_4(%arg0: i32) -> (i32, i32) {
    %c0_i32 = arith.constant 0 : i32
    %c0_i32_0 = arith.constant 0 : i32
    %c0_i32_1 = arith.constant 0 : i32
    return %c0_i32, %c0_i32_0 : i32, i32
  }
  func.func @transform_5(%arg0: i32) -> (i32, i32, i32) {
    %c0_i32 = arith.constant 0 : i32
    %c0_i32_0 = arith.constant 0 : i32
    %c0_i32_1 = arith.constant 0 : i32
    return %arg0, %c0_i32, %c0_i32_0 : i32, i32, i32
  }
}

</mosaic_0001>

<llo_original>
// kernel: tpu_custom_call.1
$region0: #{tpu_custom_call.1}
  #allocation0 [shape = 'u32[]', space=smem, size = 0x4, offset = 0x4, fixed_abs, tag = 'smem constant byte address 0x4 - core index']
  #allocation1 [shape = 'u32[72,128]{1,0:T(1,128)}', space=vmem, size = 0x9000, scoped, tag = 'internal scratch']
  #allocation2 [shape = 'f32[200,256]{1,0:T(8,128)}', space=vmem, size = 0x32000, scoped, tag = 'scratch operand']
  #allocation3 [shape = 'f32[20,256]{1,0:T(8,128)}', space=vmem, size = 0x6000, scoped, tag = 'scratch operand']
  #allocation4 [shape = 'f32[480,144]{1,0:T(8,128)}', space=vmem, size = 0x78000, scoped, tag = 'scratch operand']
  %s0 = inlined_call_operand.vmem [shape: f32[2,10,384], index: 0, kind: input, shape index: {}]
  %s1 = inlined_call_operand.vmem [shape: f32[20,200], index: 1, kind: input, shape index: {}]
  %s2 = inlined_call_operand.vmem [shape: f32[20,1], index: 2, kind: input, shape index: {}]
  %s3 = inlined_call_operand.vmem [shape: f32[15,480], index: 3, kind: input, shape index: {}]
  %s4 = inlined_call_operand.vmem [shape: f32[15,1], index: 4, kind: input, shape index: {}]
  %s5 = inlined_call_operand.vmem [shape: f32[2,15,144], index: 5, kind: output, shape index: {}]
  %s6 = sld [smem:[#allocation0]]
  $region53: #{tpu_custom_call.1} parent=0
    _
  %s8 = ssub.s32 1, %s6
  %s9 = scalar_select 0, %s8, %s6
  loop: start=0, step=1, limit=4
  $region2: #{tpu_custom_call.1} parent=0 // loop_pre_header
    _
  $region3: #{tpu_custom_call.1} parent=0 // loop_header
    %s11 = sphi 0, %s15
    %p12 = scmp.ge.s32.totalorder %s11, 4
    %s21 = sphi 0, %s23
    %s24 = sphi 0, %s21
    %s25 = sphi 0, %s24
    %s41 = sphi 0, %s25
    %s45 = sphi 0, %s45
    %s47 = sphi 0, %s45
    %s48 = sphi 0, %s47
    %s62 = sphi 0, %s48
    %s66 = sphi 0, %s66
    %s68 = sphi 0, %s66
    %s69 = sphi 0, %s68
    %s83 = sphi 0, %s69
    %s87 = sphi 0, %s87
    %s89 = sphi 0, %s87
    %s90 = sphi 0, %s89
    %s104 = sphi 0, %s90
    %s108 = sphi 0, %s108
    %s110 = sphi 0, %s108
    %s111 = sphi 0, %s110
    %s125 = sphi 0, %s111
    %s131 = sphi 0, %s133
    %s134 = sphi 0, %s131
    %s135 = sphi 0, %s134
    %s151 = sphi 0, %s135
  $region4: #{tpu_custom_call.1} parent=0 // loop_header_branch
    %14 = sbr.rel (%p12) target = $region8
  $region5: #{tpu_custom_call.1} parent=0 // loop_body
    %s16 = ssub.s32 %s11, 1
    %s17 = ssub.s32 %s11, 2
    %s18 = sadd.s32 %s11, 1
    %s19 = ssub.s32 %s11, %s18
    %p20 = scmp.eq.s32.totalorder %s19, 0
    %s22 = sadd.s32 %s21, 1
    %s23 = scalar_select %p20, %s21, %s22
    %p26 = pneg %p20
    %p27 = scmp.eq.s32.totalorder %s11, 1
    %p28 = por %p26, %p27
    %p29 = scmp.ne.s32.totalorder %s21, %s24
    %p30 = scmp.eq.s32.totalorder %s11, 0
    %p31 = por %p29, %p30
    %p32 = scmp.ne.s32.totalorder %s21, %s24
    %p33 = scmp.eq.s32.totalorder %s16, 1
    %p34 = por %p32, %p33
    %p35 = scmp.ne.s32.totalorder %s24, %s25
    %p36 = scmp.eq.s32.totalorder %s16, 0
    %p37 = por %p35, %p36
    %p38 = scmp.ne.s32.totalorder %s24, %s25
    %p39 = scmp.eq.s32.totalorder %s17, 1
    %p40 = por %p38, %p39
    %p42 = scmp.ne.s32.totalorder %s25, %s41
    %p43 = scmp.eq.s32.totalorder %s17, 0
    %p44 = por %p42, %p43
    %s46 = sadd.s32 %s45, 1
    %p49 = scmp.eq.s32.totalorder %s11, 1
    %p50 = scmp.ne.s32.totalorder %s45, %s47
    %p51 = scmp.eq.s32.totalorder %s11, 0
    %p52 = por %p50, %p51
    %p53 = scmp.ne.s32.totalorder %s45, %s47
    %p54 = scmp.eq.s32.totalorder %s16, 1
    %p55 = por %p53, %p54
    %p56 = scmp.ne.s32.totalorder %s47, %s48
    %p57 = scmp.eq.s32.totalorder %s16, 0
    %p58 = por %p56, %p57
    %p59 = scmp.ne.s32.totalorder %s47, %s48
    %p60 = scmp.eq.s32.totalorder %s17, 1
    %p61 = por %p59, %p60
    %p63 = scmp.ne.s32.totalorder %s48, %s62
    %p64 = scmp.eq.s32.totalorder %s17, 0
    %p65 = por %p63, %p64
    %s67 = sadd.s32 %s66, 1
    %p70 = scmp.eq.s32.totalorder %s11, 1
    %p71 = scmp.ne.s32.totalorder %s66, %s68
    %p72 = scmp.eq.s32.totalorder %s11, 0
    %p73 = por %p71, %p72
    %p74 = scmp.ne.s32.totalorder %s66, %s68
    %p75 = scmp.eq.s32.totalorder %s16, 1
    %p76 = por %p74, %p75
    %p77 = scmp.ne.s32.totalorder %s68, %s69
    %p78 = scmp.eq.s32.totalorder %s16, 0
    %p79 = por %p77, %p78
    %p80 = scmp.ne.s32.totalorder %s68, %s69
    %p81 = scmp.eq.s32.totalorder %s17, 1
    %p82 = por %p80, %p81
    %p84 = scmp.ne.s32.totalorder %s69, %s83
    %p85 = scmp.eq.s32.totalorder %s17, 0
    %p86 = por %p84, %p85
    %s88 = sadd.s32 %s87, 1
    %p91 = scmp.eq.s32.totalorder %s11, 1
    %p92 = scmp.ne.s32.totalorder %s87, %s89
    %p93 = scmp.eq.s32.totalorder %s11, 0
    %p94 = por %p92, %p93
    %p95 = scmp.ne.s32.totalorder %s87, %s89
    %p96 = scmp.eq.s32.totalorder %s16, 1
    %p97 = por %p95, %p96
    %p98 = scmp.ne.s32.totalorder %s89, %s90
    %p99 = scmp.eq.s32.totalorder %s16, 0
    %p100 = por %p98, %p99
    %p101 = scmp.ne.s32.totalorder %s89, %s90
    %p102 = scmp.eq.s32.totalorder %s17, 1
    %p103 = por %p101, %p102
    %p105 = scmp.ne.s32.totalorder %s90, %s104
    %p106 = scmp.eq.s32.totalorder %s17, 0
    %p107 = por %p105, %p106
    %s109 = sadd.s32 %s108, 1
    %p112 = scmp.eq.s32.totalorder %s11, 1
    %p113 = scmp.ne.s32.totalorder %s108, %s110
    %p114 = scmp.eq.s32.totalorder %s11, 0
    %p115 = por %p113, %p114
    %p116 = scmp.ne.s32.totalorder %s108, %s110
    %p117 = scmp.eq.s32.totalorder %s16, 1
    %p118 = por %p116, %p117
    %p119 = scmp.ne.s32.totalorder %s110, %s111
    %p120 = scmp.eq.s32.totalorder %s16, 0
    %p121 = por %p119, %p120
    %p122 = scmp.ne.s32.totalorder %s110, %s111
    %p123 = scmp.eq.s32.totalorder %s17, 1
    %p124 = por %p122, %p123
    %p126 = scmp.ne.s32.totalorder %s111, %s125
    %p127 = scmp.eq.s32.totalorder %s17, 0
    %p128 = por %p126, %p127
    %s129 = ssub.s32 %s11, %s18
    %p130 = scmp.eq.s32.totalorder %s129, 0
    %s132 = sadd.s32 %s131, 1
    %s133 = scalar_select %p130, %s131, %s132
    %p136 = pneg %p130
    %p137 = scmp.eq.s32.totalorder %s11, 1
    %p138 = por %p136, %p137
    %p139 = scmp.ne.s32.totalorder %s131, %s134
    %p140 = scmp.eq.s32.totalorder %s11, 0
    %p141 = por %p139, %p140
    %p142 = scmp.ne.s32.totalorder %s131, %s134
    %p143 = scmp.eq.s32.totalorder %s16, 1
    %p144 = por %p142, %p143
    %p145 = scmp.ne.s32.totalorder %s134, %s135
    %p146 = scmp.eq.s32.totalorder %s16, 0
    %p147 = por %p145, %p146
    %p148 = scmp.ne.s32.totalorder %s134, %s135
    %p149 = scmp.eq.s32.totalorder %s17, 1
    %p150 = por %p148, %p149
    %p152 = scmp.ne.s32.totalorder %s135, %s151
    %p153 = scmp.eq.s32.totalorder %s17, 0
    %p154 = por %p152, %p153
    %p155 = scmp.le.s32.totalorder 1, %s11
    %p156 = scmp.lt.s32.totalorder %s11, 3
    %p157 = pnand %p155, %p156
    %p158 = pneg %p157
    // Predicated region
    $region9: #{tpu_custom_call.1} parent=5 // pred_check
      _
    $region10: #{tpu_custom_call.1} parent=5 // pred_check_branch
      %160 = sbr.rel (%p157) target = $region12
    $region11: #{tpu_custom_call.1} parent=5 // pred_region
      %s161 = ssub.s32 %s11, 1
      // Predicated region
      $region13: #{tpu_custom_call.1} parent=11 // pred_check
        %p162 = pneg %p58
      $region14: #{tpu_custom_call.1} parent=11 // pred_check_branch
        %164 = sbr.rel (%p162) target = $region16
      $region15: #{tpu_custom_call.1} parent=11 // pred_region
        _
      $region16: #{tpu_custom_call.1} parent=11 // pred_fallthru
        _
      // Predicated region
      $region17: #{tpu_custom_call.1} parent=11 // pred_check
        %p165 = pneg %p79
      $region18: #{tpu_custom_call.1} parent=11 // pred_check_branch
        %167 = sbr.rel (%p165) target = $region20
      $region19: #{tpu_custom_call.1} parent=11 // pred_region
        _
      $region20: #{tpu_custom_call.1} parent=11 // pred_fallthru
        _
      // Predicated region
      $region21: #{tpu_custom_call.1} parent=11 // pred_check
        %p168 = pneg %p100
      $region22: #{tpu_custom_call.1} parent=11 // pred_check_branch
        %170 = sbr.rel (%p168) target = $region24
      $region23: #{tpu_custom_call.1} parent=11 // pred_region
        _
      $region24: #{tpu_custom_call.1} parent=11 // pred_fallthru
        _
      // Predicated region
      $region25: #{tpu_custom_call.1} parent=11 // pred_check
        %p171 = pneg %p121
      $region26: #{tpu_custom_call.1} parent=11 // pred_check_branch
        %173 = sbr.rel (%p171) target = $region28
      $region27: #{tpu_custom_call.1} parent=11 // pred_region
        _
      $region28: #{tpu_custom_call.1} parent=11 // pred_fallthru
        _
    $region12: #{tpu_custom_call.1} parent=5 // pred_fallthru
      _
    %p174 = scmp.lt.s32.totalorder %s11, 2
    // Predicated region
    $region29: #{tpu_custom_call.1} parent=5 // pred_check
      %p175 = pneg %p174
    $region30: #{tpu_custom_call.1} parent=5 // pred_check_branch
      %177 = sbr.rel (%p175) target = $region32
    $region31: #{tpu_custom_call.1} parent=5 // pred_region
      // Predicated region
      $region33: #{tpu_custom_call.1} parent=31 // pred_check
        %p178 = pneg %p31
      $region34: #{tpu_custom_call.1} parent=31 // pred_check_branch
        %180 = sbr.rel (%p178) target = $region36
      $region35: #{tpu_custom_call.1} parent=31 // pred_region
        %p181 = scmp.lt.s32.totalorder %s11, 1
        %s182 = scalar_select %p181, %s11, 1
        %s183 = smul.addr %s182, 6
        %s184 = smul.addr %s183, 8
        %s185 = scalar_lea.vmem %s0, %s184
      $region36: #{tpu_custom_call.1} parent=31 // pred_fallthru
        _
    $region32: #{tpu_custom_call.1} parent=5 // pred_fallthru
      _
    %p186 = scmp.le.s32.totalorder 1, %s11
    %p187 = scmp.lt.s32.totalorder %s11, 3
    %p188 = pnand %p186, %p187
    %p189 = pneg %p188
    // Predicated region
    $region37: #{tpu_custom_call.1} parent=5 // pred_check
      _
    $region38: #{tpu_custom_call.1} parent=5 // pred_check_branch
      %191 = sbr.rel (%p188) target = $region40
    $region39: #{tpu_custom_call.1} parent=5 // pred_region
      %s192 = ssub.s32 %s11, 1
      %p193 = scmp.lt.s32.totalorder %s16, 1
      %s194 = scalar_select %p193, %s16, 1
      %s195 = smul.addr %s194, 6
      %s196 = smul.addr %s195, 8
      %s197 = scalar_lea.vmem %s0, %s196
      %p198 = pneg %p37
      %p199 = pneg %p34
      %p200 = pneg %p58
      %p201 = pneg %p55
      %p202 = pneg %p79
      %p203 = pneg %p76
      %p204 = pneg %p100
      %p205 = pneg %p97
      %p206 = pneg %p121
      %p207 = pneg %p118
      %p208 = pneg %p147
      %p209 = pneg %p144
      %p210 = scmp.lt.s32.totalorder %s16, 1
      %s211 = scalar_select %p210, %s16, 1
      %s212 = smul.addr %s211, 4
      %s213 = smul.addr %s212, 8
      %s214 = scalar_lea.vmem %s5, %s213
      %p215 = scmp.lt.s32.totalorder %s16, 1
      %s216 = scalar_select %p215, %s16, 1
      %s217 = smul.addr %s216, 6
      %s218 = smul.addr %s217, 8
      %s219 = scalar_lea.vmem %s0, %s218
      %p220 = scmp.lt.s32.totalorder %s16, 1
      %s221 = scalar_select %p220, %s16, 1
      %s222 = smul.addr %s221, 4
      %s223 = smul.addr %s222, 8
      %s224 = scalar_lea.vmem %s5, %s223
      %v225 = vld [vmem:[%s219] sm:$0xff]
      %v226 = vld [vmem:[%s219 + $0x8] sm:$0xff]
      %v227 = vld [vmem:[%s219 + $0x18] sm:$0x3]
      %v228 = vld [vmem:[%s219 + $0x20] sm:$0x3]
      %229 = vst [vmem:[#allocation2] sm:$0xff] %v225
      %230 = vst [vmem:[#allocation2 + $0x8] sm:$0xff] %v226
      %231 = vst [vmem:[#allocation2 + $0x10] sm:$0x3] %v227
      %232 = vst [vmem:[#allocation2 + $0x18] sm:$0x3] %v228
      %v233 = vld [vmem:[%s219] sm:$0xff]
      %v234 = vld [vmem:[%s219 + $0x8] sm:$0xff]
      %v235 = vld [vmem:[%s219 + $0x10] sm:$0xff]
      %v236 = vld [vmem:[%s219 + $0x18] sm:$0x3]
      %v237 = vld [vmem:[%s219 + $0x20] sm:$0x3]
      %v238 = vld [vmem:[%s219 + $0x28] sm:$0x3]
      %vm245 = vcmask 1041408
      %v246 = vrot.slane %v233, 6
      %v247 = vrot.slane %v234, 6
      %v248 = vrot.slane %v235, 6
      %v249 = vrot.slane %v236, 6
      %v250 = vsel %vm245, %v246, %v249
      %v251 = vrot.slane %v237, 6
      %v252 = vsel %vm245, %v247, %v251
      %v253 = vrot.slane %v238, 6
      %v254 = vsel %vm245, %v248, %v253
      %255 = vrot.lane.b32.xlu0 %v246, 127
      %v256 = vpop.permute.xlu0 %255
      %257 = vrot.lane.b32.xlu0 %v247, 127
      %v258 = vpop.permute.xlu0 %257
      %259 = vrot.lane.b32.xlu0 %v248, 127
      %v260 = vpop.permute.xlu0 %259
      %261 = vrot.lane.b32.xlu0 %v250, 127
      %v262 = vpop.permute.xlu0 %261
      %263 = vrot.lane.b32.xlu0 %v252, 127
      %v264 = vpop.permute.xlu0 %263
      %265 = vrot.lane.b32.xlu0 %v254, 127
      %v266 = vpop.permute.xlu0 %265
      %vm267 = vcmask 1039360
      %v268 = vsel %vm267, %v256, %v258
      %v269 = vsel %vm267, %v258, %v260
      %v270 = vsel %vm267, %v262, %v264
      %v271 = vsel %vm267, %v264, %v266
      %276 = vst [vmem:[#allocation2 + $0x10] sm:$0xfc] %v268
      %277 = vst [vmem:[#allocation2 + $0x18] sm:$0xfc] %v269
      %278 = vst [vmem:[#allocation2 + $0x20] sm:$0xf] %v270
      %279 = vst [vmem:[#allocation2 + $0x28] sm:$0xf] %v271
      %v280 = vld [vmem:[%s219] sm:$0xff]
      %v281 = vld [vmem:[%s219 + $0x8] sm:$0xff]
      %v282 = vld [vmem:[%s219 + $0x10] sm:$0xff]
      %v283 = vld [vmem:[%s219 + $0x18] sm:$0x3]
      %v284 = vld [vmem:[%s219 + $0x20] sm:$0x3]
      %v285 = vld [vmem:[%s219 + $0x28] sm:$0x3]
      %vm292 = vcmask 1043456
      %v293 = vrot.slane %v280, 4
      %v294 = vrot.slane %v281, 4
      %v295 = vrot.slane %v282, 4
      %v296 = vrot.slane %v283, 4
      %v297 = vsel %vm292, %v293, %v296
      %v298 = vrot.slane %v284, 4
      %v299 = vsel %vm292, %v294, %v298
      %v300 = vrot.slane %v285, 4
      %v301 = vsel %vm292, %v295, %v300
      %302 = vrot.lane.b32.xlu0 %v293, 126
      %v303 = vpop.permute.xlu0 %302
      %304 = vrot.lane.b32.xlu0 %v294, 126
      %v305 = vpop.permute.xlu0 %304
      %306 = vrot.lane.b32.xlu0 %v295, 126
      %v307 = vpop.permute.xlu0 %306
      %308 = vrot.lane.b32.xlu0 %v297, 126
      %v309 = vpop.permute.xlu0 %308
      %310 = vrot.lane.b32.xlu0 %v299, 126
      %v311 = vpop.permute.xlu0 %310
      %312 = vrot.lane.b32.xlu0 %v301, 126
      %v313 = vpop.permute.xlu0 %312
      %vm314 = vcmask 1031168
      %v315 = vsel %vm314, %v303, %v305
      %v316 = vsel %vm314, %v305, %v307
      %v317 = vsel %vm314, %v309, %v311
      %v318 = vsel %vm314, %v311, %v313
      %323 = vst [vmem:[#allocation2 + $0x20] sm:$0xf0] %v315
      %324 = vst [vmem:[#allocation2 + $0x28] sm:$0xf0] %v316
      %325 = vst [vmem:[#allocation2 + $0x30] sm:$0x3f] %v317
      %326 = vst [vmem:[#allocation2 + $0x38] sm:$0x3f] %v318
      %v327 = vld [vmem:[%s219] sm:$0xff]
      %v328 = vld [vmem:[%s219 + $0x8] sm:$0xff]
      %v329 = vld [vmem:[%s219 + $0x10] sm:$0xff]
      %v330 = vld [vmem:[%s219 + $0x18] sm:$0x3]
      %v331 = vld [vmem:[%s219 + $0x20] sm:$0x3]
      %v332 = vld [vmem:[%s219 + $0x28] sm:$0x3]
      %vm339 = vcmask 1045504
      %v340 = vrot.slane %v327, 2
      %v341 = vrot.slane %v328, 2
      %v342 = vrot.slane %v329, 2
      %v343 = vrot.slane %v330, 2
      %v344 = vsel %vm339, %v340, %v343
      %v345 = vrot.slane %v331, 2
      %v346 = vsel %vm339, %v341, %v345
      %v347 = vrot.slane %v332, 2
      %v348 = vsel %vm339, %v342, %v347
      %349 = vrot.lane.b32.xlu0 %v340, 125
      %v350 = vpop.permute.xlu0 %349
      %351 = vrot.lane.b32.xlu0 %v341, 125
      %v352 = vpop.permute.xlu0 %351
      %353 = vrot.lane.b32.xlu0 %v342, 125
      %v354 = vpop.permute.xlu0 %353
      %355 = vrot.lane.b32.xlu0 %v344, 125
      %v356 = vpop.permute.xlu0 %355
      %357 = vrot.lane.b32.xlu0 %v346, 125
      %v358 = vpop.permute.xlu0 %357
      %359 = vrot.lane.b32.xlu0 %v348, 125
      %v360 = vpop.permute.xlu0 %359
      %vm361 = vcmask 1022976
      %v362 = vsel %vm361, %v350, %v352
      %v363 = vsel %vm361, %v352, %v354
      %v364 = vsel %vm361, %v356, %v358
      %v365 = vsel %vm361, %v358, %v360
      %370 = vst [vmem:[#allocation2 + $0x30] sm:$0xc0] %v362
      %371 = vst [vmem:[#allocation2 + $0x38] sm:$0xc0] %v363
      %372 = vst [vmem:[#allocation2 + $0x40] sm:$0xff] %v364
      %373 = vst [vmem:[#allocation2 + $0x48] sm:$0xff] %v365
      %v374 = vld [vmem:[%s219] sm:$0xff]
      %v375 = vld [vmem:[%s219 + $0x8] sm:$0xff]
      %v376 = vld [vmem:[%s219 + $0x10] sm:$0xff]
      %v377 = vld [vmem:[%s219 + $0x18] sm:$0x3]
      %v378 = vld [vmem:[%s219 + $0x20] sm:$0x3]
      %v379 = vld [vmem:[%s219 + $0x28] sm:$0x3]
      %386 = vrot.lane.b32.xlu0 %v374, 112
      %v387 = vpop.permute.xlu0 %386
      %388 = vrot.lane.b32.xlu0 %v375, 112
      %v389 = vpop.permute.xlu0 %388
      %390 = vrot.lane.b32.xlu0 %v376, 112
      %v391 = vpop.permute.xlu0 %390
      %392 = vrot.lane.b32.xlu0 %v377, 112
      %v393 = vpop.permute.xlu0 %392
      %394 = vrot.lane.b32.xlu0 %v378, 112
      %v395 = vpop.permute.xlu0 %394
      %396 = vrot.lane.b32.xlu0 %v379, 112
      %v397 = vpop.permute.xlu0 %396
      %vm398 = vcmask 916480
      %v399 = vsel %vm398, %v387, %v389
      %v400 = vsel %vm398, %v389, %v391
      %v401 = vsel %vm398, %v393, %v395
      %v402 = vsel %vm398, %v395, %v397
      %407 = vst [vmem:[#allocation2 + $0x50] sm:$0xff] %v399
      %408 = vst [vmem:[#allocation2 + $0x58] sm:$0xff] %v400
      %409 = vst [vmem:[#allocation2 + $0x60] sm:$0x3] %v401
      %410 = vst [vmem:[#allocation2 + $0x68] sm:$0x3] %v402
      %v411 = vld [vmem:[%s219] sm:$0xff]
      %v412 = vld [vmem:[%s219 + $0x8] sm:$0xff]
      %v413 = vld [vmem:[%s219 + $0x10] sm:$0xff]
      %v414 = vld [vmem:[%s219 + $0x18] sm:$0x3]
      %v415 = vld [vmem:[%s219 + $0x20] sm:$0x3]
      %v416 = vld [vmem:[%s219 + $0x28] sm:$0x3]
      %v423 = vrot.slane %v411, 6
      %v424 = vrot.slane %v412, 6
      %v425 = vrot.slane %v413, 6
      %v426 = vrot.slane %v414, 6
      %v427 = vsel %vm245, %v423, %v426
      %v428 = vrot.slane %v415, 6
      %v429 = vsel %vm245, %v424, %v428
      %v430 = vrot.slane %v416, 6
      %v431 = vsel %vm245, %v425, %v430
      %432 = vrot.lane.b32.xlu0 %v423, 111
      %v433 = vpop.permute.xlu0 %432
      %434 = vrot.lane.b32.xlu0 %v424, 111
      %v435 = vpop.permute.xlu0 %434
      %436 = vrot.lane.b32.xlu0 %v425, 111
      %v437 = vpop.permute.xlu0 %436
      %438 = vrot.lane.b32.xlu0 %v427, 111
      %v439 = vpop.permute.xlu0 %438
      %440 = vrot.lane.b32.xlu0 %v429, 111
      %v441 = vpop.permute.xlu0 %440
      %442 = vrot.lane.b32.xlu0 %v431, 111
      %v443 = vpop.permute.xlu0 %442
      %vm444 = vcmask 908288
      %v445 = vsel %vm444, %v433, %v435
      %v446 = vsel %vm444, %v435, %v437
      %v447 = vsel %vm444, %v439, %v441
      %v448 = vsel %vm444, %v441, %v443
      %453 = vst [vmem:[#allocation2 + $0x60] sm:$0xfc] %v445
      %454 = vst [vmem:[#allocation2 + $0x68] sm:$0xfc] %v446
      %455 = vst [vmem:[#allocation2 + $0x70] sm:$0xf] %v447
      %456 = vst [vmem:[#allocation2 + $0x78] sm:$0xf] %v448
      %v457 = vld [vmem:[%s219] sm:$0xff]
      %v458 = vld [vmem:[%s219 + $0x8] sm:$0xff]
      %v459 = vld [vmem:[%s219 + $0x10] sm:$0xff]
      %v460 = vld [vmem:[%s219 + $0x18] sm:$0x3]
      %v461 = vld [vmem:[%s219 + $0x20] sm:$0x3]
      %v462 = vld [vmem:[%s219 + $0x28] sm:$0x3]
      %v469 = vrot.slane %v457, 4
      %v470 = vrot.slane %v458, 4
      %v471 = vrot.slane %v459, 4
      %v472 = vrot.slane %v460, 4
      %v473 = vsel %vm292, %v469, %v472
      %v474 = vrot.slane %v461, 4
      %v475 = vsel %vm292, %v470, %v474
      %v476 = vrot.slane %v462, 4
      %v477 = vsel %vm292, %v471, %v476
      %478 = vrot.lane.b32.xlu0 %v469, 110
      %v479 = vpop.permute.xlu0 %478
      %480 = vrot.lane.b32.xlu0 %v470, 110
      %v481 = vpop.permute.xlu0 %480
      %482 = vrot.lane.b32.xlu0 %v471, 110
      %v483 = vpop.permute.xlu0 %482
      %484 = vrot.lane.b32.xlu0 %v473, 110
      %v485 = vpop.permute.xlu0 %484
      %486 = vrot.lane.b32.xlu0 %v475, 110
      %v487 = vpop.permute.xlu0 %486
      %488 = vrot.lane.b32.xlu0 %v477, 110
      %v489 = vpop.permute.xlu0 %488
      %vm490 = vcmask 900096
      %v491 = vsel %vm490, %v479, %v481
      %v492 = vsel %vm490, %v481, %v483
      %v493 = vsel %vm490, %v485, %v487
      %v494 = vsel %vm490, %v487, %v489
      %499 = vst [vmem:[#allocation2 + $0x70] sm:$0xf0] %v491
      %500 = vst [vmem:[#allocation2 + $0x78] sm:$0xf0] %v492
      %501 = vst [vmem:[#allocation2 + $0x80] sm:$0x3f] %v493
      %502 = vst [vmem:[#allocation2 + $0x88] sm:$0x3f] %v494
      %v503 = vld [vmem:[%s219] sm:$0xff]
      %v504 = vld [vmem:[%s219 + $0x8] sm:$0xff]
      %v505 = vld [vmem:[%s219 + $0x10] sm:$0xff]
      %v506 = vld [vmem:[%s219 + $0x18] sm:$0x3]
      %v507 = vld [vmem:[%s219 + $0x20] sm:$0x3]
      %v508 = vld [vmem:[%s219 + $0x28] sm:$0x3]
      %v515 = vrot.slane %v503, 2
      %v516 = vrot.slane %v504, 2
      %v517 = vrot.slane %v505, 2
      %v518 = vrot.slane %v506, 2
      %v519 = vsel %vm339, %v515, %v518
      %v520 = vrot.slane %v507, 2
      %v521 = vsel %vm339, %v516, %v520
      %v522 = vrot.slane %v508, 2
      %v523 = vsel %vm339, %v517, %v522
      %524 = vrot.lane.b32.xlu0 %v515, 109
      %v525 = vpop.permute.xlu0 %524
      %526 = vrot.lane.b32.xlu0 %v516, 109
      %v527 = vpop.permute.xlu0 %526
      %528 = vrot.lane.b32.xlu0 %v517, 109
      %v529 = vpop.permute.xlu0 %528
      %530 = vrot.lane.b32.xlu0 %v519, 109
      %v531 = vpop.permute.xlu0 %530
      %532 = vrot.lane.b32.xlu0 %v521, 109
      %v533 = vpop.permute.xlu0 %532
      %534 = vrot.lane.b32.xlu0 %v523, 109
      %v535 = vpop.permute.xlu0 %534
      %vm536 = vcmask 891904
      %v537 = vsel %vm536, %v525, %v527
      %v538 = vsel %vm536, %v527, %v529
      %v539 = vsel %vm536, %v531, %v533
      %v540 = vsel %vm536, %v533, %v535
      %545 = vst [vmem:[#allocation2 + $0x80] sm:$0xc0] %v537
      %546 = vst [vmem:[#allocation2 + $0x88] sm:$0xc0] %v538
      %547 = vst [vmem:[#allocation2 + $0x90] sm:$0xff] %v539
      %548 = vst [vmem:[#allocation2 + $0x98] sm:$0xff] %v540
      %v549 = vld [vmem:[%s219] sm:$0xff]
      %v550 = vld [vmem:[%s219 + $0x8] sm:$0xff]
      %v551 = vld [vmem:[%s219 + $0x10] sm:$0xff]
      %v552 = vld [vmem:[%s219 + $0x18] sm:$0x3]
      %v553 = vld [vmem:[%s219 + $0x20] sm:$0x3]
      %v554 = vld [vmem:[%s219 + $0x28] sm:$0x3]
      %561 = vrot.lane.b32.xlu0 %v549, 96
      %v562 = vpop.permute.xlu0 %561
      %563 = vrot.lane.b32.xlu0 %v550, 96
      %v564 = vpop.permute.xlu0 %563
      %565 = vrot.lane.b32.xlu0 %v551, 96
      %v566 = vpop.permute.xlu0 %565
      %567 = vrot.lane.b32.xlu0 %v552, 96
      %v568 = vpop.permute.xlu0 %567
      %569 = vrot.lane.b32.xlu0 %v553, 96
      %v570 = vpop.permute.xlu0 %569
      %571 = vrot.lane.b32.xlu0 %v554, 96
      %v572 = vpop.permute.xlu0 %571
      %vm573 = vcmask 785408
      %v574 = vsel %vm573, %v562, %v564
      %v575 = vsel %vm573, %v564, %v566
      %v576 = vsel %vm573, %v568, %v570
      %v577 = vsel %vm573, %v570, %v572
      %582 = vst [vmem:[#allocation2 + $0xa0] sm:$0xff] %v574
      %583 = vst [vmem:[#allocation2 + $0xa8] sm:$0xff] %v575
      %584 = vst [vmem:[#allocation2 + $0xb0] sm:$0x3] %v576
      %585 = vst [vmem:[#allocation2 + $0xb8] sm:$0x3] %v577
      %v586 = vld [vmem:[%s219] sm:$0xff]
      %v587 = vld [vmem:[%s219 + $0x8] sm:$0xff]
      %v588 = vld [vmem:[%s219 + $0x10] sm:$0xff]
      %v589 = vld [vmem:[%s219 + $0x18] sm:$0x3]
      %v590 = vld [vmem:[%s219 + $0x20] sm:$0x3]
      %v591 = vld [vmem:[%s219 + $0x28] sm:$0x3]
      %v598 = vrot.slane %v586, 6
      %v599 = vrot.slane %v587, 6
      %v600 = vrot.slane %v588, 6
      %v601 = vrot.slane %v589, 6
      %v602 = vsel %vm245, %v598, %v601
      %v603 = vrot.slane %v590, 6
      %v604 = vsel %vm245, %v599, %v603
      %v605 = vrot.slane %v591, 6
      %v606 = vsel %vm245, %v600, %v605
      %607 = vrot.lane.b32.xlu0 %v598, 95
      %v608 = vpop.permute.xlu0 %607
      %609 = vrot.lane.b32.xlu0 %v599, 95
      %v610 = vpop.permute.xlu0 %609
      %611 = vrot.lane.b32.xlu0 %v600, 95
      %v612 = vpop.permute.xlu0 %611
      %613 = vrot.lane.b32.xlu0 %v602, 95
      %v614 = vpop.permute.xlu0 %613
      %615 = vrot.lane.b32.xlu0 %v604, 95
      %v616 = vpop.permute.xlu0 %615
      %617 = vrot.lane.b32.xlu0 %v606, 95
      %v618 = vpop.permute.xlu0 %617
      %vm619 = vcmask 777216
      %v620 = vsel %vm619, %v608, %v610
      %v621 = vsel %vm619, %v610, %v612
      %v622 = vsel %vm619, %v614, %v616
      %v623 = vsel %vm619, %v616, %v618
      %628 = vst [vmem:[#allocation2 + $0xb0] sm:$0xfc] %v620
      %629 = vst [vmem:[#allocation2 + $0xb8] sm:$0xfc] %v621
      %630 = vst [vmem:[#allocation2 + $0xc0] sm:$0xf] %v622
      %631 = vst [vmem:[#allocation2 + $0xc8] sm:$0xf] %v623
      %v632 = vld [vmem:[%s219] sm:$0xff]
      %v633 = vld [vmem:[%s219 + $0x8] sm:$0xff]
      %v634 = vld [vmem:[%s219 + $0x10] sm:$0xff]
      %v635 = vld [vmem:[%s219 + $0x18] sm:$0x3]
      %v636 = vld [vmem:[%s219 + $0x20] sm:$0x3]
      %v637 = vld [vmem:[%s219 + $0x28] sm:$0x3]
      %v644 = vrot.slane %v632, 4
      %v645 = vrot.slane %v633, 4
      %v646 = vrot.slane %v634, 4
      %v647 = vrot.slane %v635, 4
      %v648 = vsel %vm292, %v644, %v647
      %v649 = vrot.slane %v636, 4
      %v650 = vsel %vm292, %v645, %v649
      %v651 = vrot.slane %v637, 4
      %v652 = vsel %vm292, %v646, %v651
      %653 = vrot.lane.b32.xlu0 %v644, 94
      %v654 = vpop.permute.xlu0 %653
      %655 = vrot.lane.b32.xlu0 %v645, 94
      %v656 = vpop.permute.xlu0 %655
      %657 = vrot.lane.b32.xlu0 %v646, 94
      %v658 = vpop.permute.xlu0 %657
      %659 = vrot.lane.b32.xlu0 %v648, 94
      %v660 = vpop.permute.xlu0 %659
      %661 = vrot.lane.b32.xlu0 %v650, 94
      %v662 = vpop.permute.xlu0 %661
      %663 = vrot.lane.b32.xlu0 %v652, 94
      %v664 = vpop.permute.xlu0 %663
      %vm665 = vcmask 769024
      %v666 = vsel %vm665, %v654, %v656
      %v667 = vsel %vm665, %v656, %v658
      %v668 = vsel %vm665, %v660, %v662
      %v669 = vsel %vm665, %v662, %v664
      %674 = vst [vmem:[#allocation2 + $0xc0] sm:$0xf0] %v666
      %675 = vst [vmem:[#allocation2 + $0xc8] sm:$0xf0] %v667
      %676 = vst [vmem:[#allocation2 + $0xd0] sm:$0x3f] %v668
      %677 = vst [vmem:[#allocation2 + $0xd8] sm:$0x3f] %v669
      %v678 = vld [vmem:[%s219] sm:$0xff]
      %v679 = vld [vmem:[%s219 + $0x8] sm:$0xff]
      %v680 = vld [vmem:[%s219 + $0x10] sm:$0xff]
      %v681 = vld [vmem:[%s219 + $0x18] sm:$0x3]
      %v682 = vld [vmem:[%s219 + $0x20] sm:$0x3]
      %v683 = vld [vmem:[%s219 + $0x28] sm:$0x3]
      %v690 = vrot.slane %v678, 2
      %v691 = vrot.slane %v679, 2
      %v692 = vrot.slane %v680, 2
      %v693 = vrot.slane %v681, 2
      %v694 = vsel %vm339, %v690, %v693
      %v695 = vrot.slane %v682, 2
      %v696 = vsel %vm339, %v691, %v695
      %v697 = vrot.slane %v683, 2
      %v698 = vsel %vm339, %v692, %v697
      %699 = vrot.lane.b32.xlu0 %v690, 93
      %v700 = vpop.permute.xlu0 %699
      %701 = vrot.lane.b32.xlu0 %v691, 93
      %v702 = vpop.permute.xlu0 %701
      %703 = vrot.lane.b32.xlu0 %v692, 93
      %v704 = vpop.permute.xlu0 %703
      %705 = vrot.lane.b32.xlu0 %v694, 93
      %v706 = vpop.permute.xlu0 %705
      %707 = vrot.lane.b32.xlu0 %v696, 93
      %v708 = vpop.permute.xlu0 %707
      %709 = vrot.lane.b32.xlu0 %v698, 93
      %v710 = vpop.permute.xlu0 %709
      %vm711 = vcmask 760832
      %v712 = vsel %vm711, %v700, %v702
      %v713 = vsel %vm711, %v702, %v704
      %v714 = vsel %vm711, %v706, %v708
      %v715 = vsel %vm711, %v708, %v710
      %720 = vst [vmem:[#allocation2 + $0xd0] sm:$0xc0] %v712
      %721 = vst [vmem:[#allocation2 + $0xd8] sm:$0xc0] %v713
      %722 = vst [vmem:[#allocation2 + $0xe0] sm:$0xff] %v714
      %723 = vst [vmem:[#allocation2 + $0xe8] sm:$0xff] %v715
      %v724 = vld [vmem:[%s219] sm:$0xff]
      %v725 = vld [vmem:[%s219 + $0x8] sm:$0xff]
      %v726 = vld [vmem:[%s219 + $0x10] sm:$0xff]
      %v727 = vld [vmem:[%s219 + $0x18] sm:$0x3]
      %v728 = vld [vmem:[%s219 + $0x20] sm:$0x3]
      %v729 = vld [vmem:[%s219 + $0x28] sm:$0x3]
      %736 = vrot.lane.b32.xlu0 %v724, 80
      %v737 = vpop.permute.xlu0 %736
      %738 = vrot.lane.b32.xlu0 %v725, 80
      %v739 = vpop.permute.xlu0 %738
      %740 = vrot.lane.b32.xlu0 %v726, 80
      %v741 = vpop.permute.xlu0 %740
      %742 = vrot.lane.b32.xlu0 %v727, 80
      %v743 = vpop.permute.xlu0 %742
      %744 = vrot.lane.b32.xlu0 %v728, 80
      %v745 = vpop.permute.xlu0 %744
      %746 = vrot.lane.b32.xlu0 %v729, 80
      %v747 = vpop.permute.xlu0 %746
      %vm748 = vcmask 654336
      %v749 = vsel %vm748, %v737, %v739
      %v750 = vsel %vm748, %v739, %v741
      %v751 = vsel %vm748, %v743, %v745
      %v752 = vsel %vm748, %v745, %v747
      %757 = vst [vmem:[#allocation2 + $0xf0] sm:$0xff] %v749
      %758 = vst [vmem:[#allocation2 + $0xf8] sm:$0xff] %v750
      %759 = vst [vmem:[#allocation2 + $0x100] sm:$0x3] %v751
      %760 = vst [vmem:[#allocation2 + $0x108] sm:$0x3] %v752
      %v761 = vld [vmem:[%s219] sm:$0xff]
      %v762 = vld [vmem:[%s219 + $0x8] sm:$0xff]
      %v763 = vld [vmem:[%s219 + $0x10] sm:$0xff]
      %v764 = vld [vmem:[%s219 + $0x18] sm:$0x3]
      %v765 = vld [vmem:[%s219 + $0x20] sm:$0x3]
      %v766 = vld [vmem:[%s219 + $0x28] sm:$0x3]
      %v773 = vrot.slane %v761, 6
      %v774 = vrot.slane %v762, 6
      %v775 = vrot.slane %v763, 6
      %v776 = vrot.slane %v764, 6
      %v777 = vsel %vm245, %v773, %v776
      %v778 = vrot.slane %v765, 6
      %v779 = vsel %vm245, %v774, %v778
      %v780 = vrot.slane %v766, 6
      %v781 = vsel %vm245, %v775, %v780
      %782 = vrot.lane.b32.xlu0 %v773, 79
      %v783 = vpop.permute.xlu0 %782
      %784 = vrot.lane.b32.xlu0 %v774, 79
      %v785 = vpop.permute.xlu0 %784
      %786 = vrot.lane.b32.xlu0 %v775, 79
      %v787 = vpop.permute.xlu0 %786
      %788 = vrot.lane.b32.xlu0 %v777, 79
      %v789 = vpop.permute.xlu0 %788
      %790 = vrot.lane.b32.xlu0 %v779, 79
      %v791 = vpop.permute.xlu0 %790
      %792 = vrot.lane.b32.xlu0 %v781, 79
      %v793 = vpop.permute.xlu0 %792
      %vm794 = vcmask 646144
      %v795 = vsel %vm794, %v783, %v785
      %v796 = vsel %vm794, %v785, %v787
      %v797 = vsel %vm794, %v789, %v791
      %v798 = vsel %vm794, %v791, %v793
      %803 = vst [vmem:[#allocation2 + $0x100] sm:$0xfc] %v795
      %804 = vst [vmem:[#allocation2 + $0x108] sm:$0xfc] %v796
      %805 = vst [vmem:[#allocation2 + $0x110] sm:$0xf] %v797
      %806 = vst [vmem:[#allocation2 + $0x118] sm:$0xf] %v798
      %v807 = vld [vmem:[%s219] sm:$0xff]
      %v808 = vld [vmem:[%s219 + $0x8] sm:$0xff]
      %v809 = vld [vmem:[%s219 + $0x10] sm:$0xff]
      %v810 = vld [vmem:[%s219 + $0x18] sm:$0x3]
      %v811 = vld [vmem:[%s219 + $0x20] sm:$0x3]
      %v812 = vld [vmem:[%s219 + $0x28] sm:$0x3]
      %v819 = vrot.slane %v807, 4
      %v820 = vrot.slane %v808, 4
      %v821 = vrot.slane %v809, 4
      %v822 = vrot.slane %v810, 4
      %v823 = vsel %vm292, %v819, %v822
      %v824 = vrot.slane %v811, 4
      %v825 = vsel %vm292, %v820, %v824
      %v826 = vrot.slane %v812, 4
      %v827 = vsel %vm292, %v821, %v826
      %828 = vrot.lane.b32.xlu0 %v819, 78
      %v829 = vpop.permute.xlu0 %828
      %830 = vrot.lane.b32.xlu0 %v820, 78
      %v831 = vpop.permute.xlu0 %830
      %832 = vrot.lane.b32.xlu0 %v821, 78
      %v833 = vpop.permute.xlu0 %832
      %834 = vrot.lane.b32.xlu0 %v823, 78
      %v835 = vpop.permute.xlu0 %834
      %836 = vrot.lane.b32.xlu0 %v825, 78
      %v837 = vpop.permute.xlu0 %836
      %838 = vrot.lane.b32.xlu0 %v827, 78
      %v839 = vpop.permute.xlu0 %838
      %vm840 = vcmask 637952
      %v841 = vsel %vm840, %v829, %v831
      %v842 = vsel %vm840, %v831, %v833
      %v843 = vsel %vm840, %v835, %v837
      %v844 = vsel %vm840, %v837, %v839
      %849 = vst [vmem:[#allocation2 + $0x110] sm:$0xf0] %v841
      %850 = vst [vmem:[#allocation2 + $0x118] sm:$0xf0] %v842
      %851 = vst [vmem:[#allocation2 + $0x120] sm:$0x3f] %v843
      %852 = vst [vmem:[#allocation2 + $0x128] sm:$0x3f] %v844
      %v853 = vld [vmem:[%s219] sm:$0xff]
      %v854 = vld [vmem:[%s219 + $0x8] sm:$0xff]
      %v855 = vld [vmem:[%s219 + $0x10] sm:$0xff]
      %v856 = vld [vmem:[%s219 + $0x18] sm:$0x3]
      %v857 = vld [vmem:[%s219 + $0x20] sm:$0x3]
      %v858 = vld [vmem:[%s219 + $0x28] sm:$0x3]
      %v865 = vrot.slane %v853, 2
      %v866 = vrot.slane %v854, 2
      %v867 = vrot.slane %v855, 2
      %v868 = vrot.slane %v856, 2
      %v869 = vsel %vm339, %v865, %v868
      %v870 = vrot.slane %v857, 2
      %v871 = vsel %vm339, %v866, %v870
      %v872 = vrot.slane %v858, 2
      %v873 = vsel %vm339, %v867, %v872
      %874 = vrot.lane.b32.xlu0 %v865, 77
      %v875 = vpop.permute.xlu0 %874
      %876 = vrot.lane.b32.xlu0 %v866, 77
      %v877 = vpop.permute.xlu0 %876
      %878 = vrot.lane.b32.xlu0 %v867, 77
      %v879 = vpop.permute.xlu0 %878
      %880 = vrot.lane.b32.xlu0 %v869, 77
      %v881 = vpop.permute.xlu0 %880
      %882 = vrot.lane.b32.xlu0 %v871, 77
      %v883 = vpop.permute.xlu0 %882
      %884 = vrot.lane.b32.xlu0 %v873, 77
      %v885 = vpop.permute.xlu0 %884
      %vm886 = vcmask 629760
      %v887 = vsel %vm886, %v875, %v877
      %v888 = vsel %vm886, %v877, %v879
      %v889 = vsel %vm886, %v881, %v883
      %v890 = vsel %vm886, %v883, %v885
      %895 = vst [vmem:[#allocation2 + $0x120] sm:$0xc0] %v887
      %896 = vst [vmem:[#allocation2 + $0x128] sm:$0xc0] %v888
      %897 = vst [vmem:[#allocation2 + $0x130] sm:$0xff] %v889
      %898 = vst [vmem:[#allocation2 + $0x138] sm:$0xff] %v890
      %v899 = vld [vmem:[%s219] sm:$0xff]
      %v900 = vld [vmem:[%s219 + $0x8] sm:$0xff]
      %v901 = vld [vmem:[%s219 + $0x10] sm:$0xff]
      %v902 = vld [vmem:[%s219 + $0x18] sm:$0x3]
      %v903 = vld [vmem:[%s219 + $0x20] sm:$0x3]
      %v904 = vld [vmem:[%s219 + $0x28] sm:$0x3]
      %911 = vrot.lane.b32.xlu0 %v899, 64
      %v912 = vpop.permute.xlu0 %911
      %913 = vrot.lane.b32.xlu0 %v900, 64
      %v914 = vpop.permute.xlu0 %913
      %915 = vrot.lane.b32.xlu0 %v901, 64
      %v916 = vpop.permute.xlu0 %915
      %917 = vrot.lane.b32.xlu0 %v902, 64
      %v918 = vpop.permute.xlu0 %917
      %919 = vrot.lane.b32.xlu0 %v903, 64
      %v920 = vpop.permute.xlu0 %919
      %921 = vrot.lane.b32.xlu0 %v904, 64
      %v922 = vpop.permute.xlu0 %921
      %vm923 = vcmask 523264
      %v924 = vsel %vm923, %v912, %v914
      %v925 = vsel %vm923, %v914, %v916
      %v926 = vsel %vm923, %v918, %v920
      %v927 = vsel %vm923, %v920, %v922
      %932 = vst [vmem:[#allocation2 + $0x140] sm:$0xff] %v924
      %933 = vst [vmem:[#allocation2 + $0x148] sm:$0xff] %v925
      %934 = vst [vmem:[#allocation2 + $0x150] sm:$0x3] %v926
      %935 = vst [vmem:[#allocation2 + $0x158] sm:$0x3] %v927
      %v936 = vld [vmem:[%s219] sm:$0xff]
      %v937 = vld [vmem:[%s219 + $0x8] sm:$0xff]
      %v938 = vld [vmem:[%s219 + $0x10] sm:$0xff]
      %v939 = vld [vmem:[%s219 + $0x18] sm:$0x3]
      %v940 = vld [vmem:[%s219 + $0x20] sm:$0x3]
      %v941 = vld [vmem:[%s219 + $0x28] sm:$0x3]
      %v948 = vrot.slane %v936, 6
      %v949 = vrot.slane %v937, 6
      %v950 = vrot.slane %v938, 6
      %v951 = vrot.slane %v939, 6
      %v952 = vsel %vm245, %v948, %v951
      %v953 = vrot.slane %v940, 6
      %v954 = vsel %vm245, %v949, %v953
      %v955 = vrot.slane %v941, 6
      %v956 = vsel %vm245, %v950, %v955
      %957 = vrot.lane.b32.xlu0 %v948, 63
      %v958 = vpop.permute.xlu0 %957
      %959 = vrot.lane.b32.xlu0 %v949, 63
      %v960 = vpop.permute.xlu0 %959
      %961 = vrot.lane.b32.xlu0 %v950, 63
      %v962 = vpop.permute.xlu0 %961
      %963 = vrot.lane.b32.xlu0 %v952, 63
      %v964 = vpop.permute.xlu0 %963
      %965 = vrot.lane.b32.xlu0 %v954, 63
      %v966 = vpop.permute.xlu0 %965
      %967 = vrot.lane.b32.xlu0 %v956, 63
      %v968 = vpop.permute.xlu0 %967
      %vm969 = vcmask 515072
      %v970 = vsel %vm969, %v958, %v960
      %v971 = vsel %vm969, %v960, %v962
      %v972 = vsel %vm969, %v964, %v966
      %v973 = vsel %vm969, %v966, %v968
      %978 = vst [vmem:[#allocation2 + $0x150] sm:$0xfc] %v970
      %979 = vst [vmem:[#allocation2 + $0x158] sm:$0xfc] %v971
      %980 = vst [vmem:[#allocation2 + $0x160] sm:$0xf] %v972
      %981 = vst [vmem:[#allocation2 + $0x168] sm:$0xf] %v973
      %v982 = vld [vmem:[%s219] sm:$0xff]
      %v983 = vld [vmem:[%s219 + $0x8] sm:$0xff]
      %v984 = vld [vmem:[%s219 + $0x10] sm:$0xff]
      %v985 = vld [vmem:[%s219 + $0x18] sm:$0x3]
      %v986 = vld [vmem:[%s219 + $0x20] sm:$0x3]
      %v987 = vld [vmem:[%s219 + $0x28] sm:$0x3]
      %v994 = vrot.slane %v982, 4
      %v995 = vrot.slane %v983, 4
      %v996 = vrot.slane %v984, 4
      %v997 = vrot.slane %v985, 4
      %v998 = vsel %vm292, %v994, %v997
      %v999 = vrot.slane %v986, 4
      %v1000 = vsel %vm292, %v995, %v999
      %v1001 = vrot.slane %v987, 4
      %v1002 = vsel %vm292, %v996, %v1001
      %1003 = vrot.lane.b32.xlu0 %v994, 62
      %v1004 = vpop.permute.xlu0 %1003
      %1005 = vrot.lane.b32.xlu0 %v995, 62
      %v1006 = vpop.permute.xlu0 %1005
      %1007 = vrot.lane.b32.xlu0 %v996, 62
      %v1008 = vpop.permute.xlu0 %1007
      %1009 = vrot.lane.b32.xlu0 %v998, 62
      %v1010 = vpop.permute.xlu0 %1009
      %1011 = vrot.lane.b32.xlu0 %v1000, 62
      %v1012 = vpop.permute.xlu0 %1011
      %1013 = vrot.lane.b32.xlu0 %v1002, 62
      %v1014 = vpop.permute.xlu0 %1013
      %vm1015 = vcmask 506880
      %v1016 = vsel %vm1015, %v1004, %v1006
      %v1017 = vsel %vm1015, %v1006, %v1008
      %v1018 = vsel %vm1015, %v1010, %v1012
      %v1019 = vsel %vm1015, %v1012, %v1014
      %1024 = vst [vmem:[#allocation2 + $0x160] sm:$0xf0] %v1016
      %1025 = vst [vmem:[#allocation2 + $0x168] sm:$0xf0] %v1017
      %1026 = vst [vmem:[#allocation2 + $0x170] sm:$0x3f] %v1018
      %1027 = vst [vmem:[#allocation2 + $0x178] sm:$0x3f] %v1019
      %v1028 = vld [vmem:[%s219] sm:$0xff]
      %v1029 = vld [vmem:[%s219 + $0x8] sm:$0xff]
      %v1030 = vld [vmem:[%s219 + $0x10] sm:$0xff]
      %v1031 = vld [vmem:[%s219 + $0x18] sm:$0x3]
      %v1032 = vld [vmem:[%s219 + $0x20] sm:$0x3]
      %v1033 = vld [vmem:[%s219 + $0x28] sm:$0x3]
      %v1040 = vrot.slane %v1028, 2
      %v1041 = vrot.slane %v1029, 2
      %v1042 = vrot.slane %v1030, 2
      %v1043 = vrot.slane %v1031, 2
      %v1044 = vsel %vm339, %v1040, %v1043
      %v1045 = vrot.slane %v1032, 2
      %v1046 = vsel %vm339, %v1041, %v1045
      %v1047 = vrot.slane %v1033, 2
      %v1048 = vsel %vm339, %v1042, %v1047
      %1049 = vrot.lane.b32.xlu0 %v1040, 61
      %v1050 = vpop.permute.xlu0 %1049
      %1051 = vrot.lane.b32.xlu0 %v1041, 61
      %v1052 = vpop.permute.xlu0 %1051
      %1053 = vrot.lane.b32.xlu0 %v1042, 61
      %v1054 = vpop.permute.xlu0 %1053
      %1055 = vrot.lane.b32.xlu0 %v1044, 61
      %v1056 = vpop.permute.xlu0 %1055
      %1057 = vrot.lane.b32.xlu0 %v1046, 61
      %v1058 = vpop.permute.xlu0 %1057
      %1059 = vrot.lane.b32.xlu0 %v1048, 61
      %v1060 = vpop.permute.xlu0 %1059
      %vm1061 = vcmask 498688
      %v1062 = vsel %vm1061, %v1050, %v1052
      %v1063 = vsel %vm1061, %v1052, %v1054
      %v1064 = vsel %vm1061, %v1056, %v1058
      %v1065 = vsel %vm1061, %v1058, %v1060
      %1070 = vst [vmem:[#allocation2 + $0x170] sm:$0xc0] %v1062
      %1071 = vst [vmem:[#allocation2 + $0x178] sm:$0xc0] %v1063
      %1072 = vst [vmem:[#allocation2 + $0x180] sm:$0xff] %v1064
      %1073 = vst [vmem:[#allocation2 + $0x188] sm:$0xff] %v1065
      %v1074 = vld [vmem:[%s1] sm:$0xff]
      %v1075 = vld [vmem:[%s1 + $0x8] sm:$0xff]
      %v1076 = vld [vmem:[%s1 + $0x10] sm:$0xff]
      %v1077 = vld [vmem:[%s1 + $0x18] sm:$0xff]
      %v1078 = vld [vmem:[%s1 + $0x20] sm:$0xf]
      %v1079 = vld [vmem:[%s1 + $0x28] sm:$0xf]
      %v1080 = vld [vmem:[#allocation2] sm:$0xff]
      %v1081 = vld [vmem:[#allocation2 + $0x8] sm:$0xff]
      %v1082 = vld [vmem:[#allocation2 + $0x10] sm:$0xff]
      %v1083 = vld [vmem:[#allocation2 + $0x18] sm:$0xff]
      %v1084 = vld [vmem:[#allocation2 + $0x20] sm:$0xff]
      %v1085 = vld [vmem:[#allocation2 + $0x28] sm:$0xff]
      %v1086 = vld [vmem:[#allocation2 + $0x30] sm:$0xff]
      %v1087 = vld [vmem:[#allocation2 + $0x38] sm:$0xff]
      %v1088 = vld [vmem:[#allocation2 + $0x40] sm:$0xff]
      %v1089 = vld [vmem:[#allocation2 + $0x48] sm:$0xff]
      %v1090 = vld [vmem:[#allocation2 + $0x50] sm:$0xff]
      %v1091 = vld [vmem:[#allocation2 + $0x58] sm:$0xff]
      %v1092 = vld [vmem:[#allocation2 + $0x60] sm:$0xff]
      %v1093 = vld [vmem:[#allocation2 + $0x68] sm:$0xff]
      %v1094 = vld [vmem:[#allocation2 + $0x70] sm:$0xff]
      %v1095 = vld [vmem:[#allocation2 + $0x78] sm:$0xff]
      %v1096 = vld [vmem:[#allocation2 + $0x80] sm:$0xff]
      %v1097 = vld [vmem:[#allocation2 + $0x88] sm:$0xff]
      %v1098 = vld [vmem:[#allocation2 + $0x90] sm:$0xff]
      %v1099 = vld [vmem:[#allocation2 + $0x98] sm:$0xff]
      %v1100 = vld [vmem:[#allocation2 + $0xa0] sm:$0xff]
      %v1101 = vld [vmem:[#allocation2 + $0xa8] sm:$0xff]
      %v1102 = vld [vmem:[#allocation2 + $0xb0] sm:$0xff]
      %v1103 = vld [vmem:[#allocation2 + $0xb8] sm:$0xff]
      %v1104 = vld [vmem:[#allocation2 + $0xc0] sm:$0xff]
      %v1105 = vld [vmem:[#allocation2 + $0xc8] sm:$0xff]
      %v1106 = vld [vmem:[#allocation2 + $0xd0] sm:$0xff]
      %v1107 = vld [vmem:[#allocation2 + $0xd8] sm:$0xff]
      %v1108 = vld [vmem:[#allocation2 + $0xe0] sm:$0xff]
      %v1109 = vld [vmem:[#allocation2 + $0xe8] sm:$0xff]
      %v1110 = vld [vmem:[#allocation2 + $0xf0] sm:$0xff]
      %v1111 = vld [vmem:[#allocation2 + $0xf8] sm:$0xff]
      %v1112 = vld [vmem:[#allocation2 + $0x100] sm:$0xff]
      %v1113 = vld [vmem:[#allocation2 + $0x108] sm:$0xff]
      %v1114 = vld [vmem:[#allocation2 + $0x110] sm:$0xff]
      %v1115 = vld [vmem:[#allocation2 + $0x118] sm:$0xff]
      %v1116 = vld [vmem:[#allocation2 + $0x120] sm:$0xff]
      %v1117 = vld [vmem:[#allocation2 + $0x128] sm:$0xff]
      %v1118 = vld [vmem:[#allocation2 + $0x130] sm:$0xff]
      %v1119 = vld [vmem:[#allocation2 + $0x138] sm:$0xff]
      %v1120 = vld [vmem:[#allocation2 + $0x140] sm:$0xff]
      %v1121 = vld [vmem:[#allocation2 + $0x148] sm:$0xff]
      %v1122 = vld [vmem:[#allocation2 + $0x150] sm:$0xff]
      %v1123 = vld [vmem:[#allocation2 + $0x158] sm:$0xff]
      %v1124 = vld [vmem:[#allocation2 + $0x160] sm:$0xff]
      %v1125 = vld [vmem:[#allocation2 + $0x168] sm:$0xff]
      %v1126 = vld [vmem:[#allocation2 + $0x170] sm:$0xff]
      %v1127 = vld [vmem:[#allocation2 + $0x178] sm:$0xff]
      %v1128 = vld [vmem:[#allocation2 + $0x180] sm:$0xff]
      %v1129 = vld [vmem:[#allocation2 + $0x188] sm:$0xff]
      %v1130 = vld [vmem:[%s2] sm:$0xff]
      %v1131 = vld [vmem:[%s2 + $0x8] sm:$0xff]
      %v1132 = vld [vmem:[%s2 + $0x10] sm:$0xf]
      %1134 = vset.pattern.permute.xlu0 0
      %1135 = vperm.xlu0 %1134, %v1130
      %v1136 = vpop.permute.xlu0 %1135
      %1139 = vset.pattern.permute.xlu0 0
      %1140 = vperm.xlu0 %1139, %v1131
      %v1141 = vpop.permute.xlu0 %1140
      %1144 = vset.pattern.permute.xlu0 0
      %1145 = vperm.xlu0 %1144, %v1132
      %v1146 = vpop.permute.xlu0 %1145
      %vm1148 = vcmask 588800
      %v1150 = vsel %vm1148, %v1075, 0
      %v1153 = vsel %vm1148, %v1077, 0
      %v1156 = vsel %vm1148, %v1079, 0
      %1158 = vmatpush.msra.mxu0 %v1110
      %1159 = vmatpush.msra.mxu0 %v1108
      %1160 = vmatpush.msra.mxu0 %v1106
      %1161 = vmatpush.msra.mxu0 %v1104
      %1162 = vmatpush.msra.mxu0 %v1102
      %1163 = vmatpush.msra.mxu0 %v1100
      %1164 = vmatpush.msra.mxu0 %v1098
      %1165 = vmatpush.msra.mxu0 %v1096
      %1166 = vmatpush.msra.mxu0 %v1094
      %1167 = vmatpush.msra.mxu0 %v1092
      %1168 = vmatpush.msra.mxu0 %v1090
      %1169 = vmatpush.msra.mxu0 %v1088
      %1170 = vmatpush.msra.mxu0 %v1086
      %1171 = vmatpush.msra.mxu0 %v1084
      %1172 = vmatpush.msra.mxu0 %v1082
      %1173 = vmatpush.msra.mxu0 %v1080
      %1174 = vmatmul.f32.gmra.mxu0 %v1074
      %v1175 = vpop.f32.mrf.mxu0
      %v1176 = vadd.f32 %v1136, %v1175
      %1177 = vmatmul.f32.gmra.mxu0 %v1076
      %v1178 = vpop.f32.mrf.mxu0
      %v1179 = vadd.f32 %v1141, %v1178
      %1180 = vmatmul.f32.gmra.mxu0 %v1078
      %v1181 = vpop.f32.mrf.mxu0
      %v1182 = vadd.f32 %v1146, %v1181
      %1183 = vdwg.mxu0
      %1184 = vmatpush.msra.mxu0 0.0
      %1185 = vmatpush.msra.mxu0 0.0
      %1186 = vmatpush.msra.mxu0 0.0
      %1187 = vmatpush.msra.mxu0 0.0
      %1188 = vmatpush.msra.mxu0 0.0
      %1189 = vmatpush.msra.mxu0 0.0
      %1190 = vmatpush.msra.mxu0 0.0
      %1191 = vmatpush.msra.mxu0 %v1128
      %1192 = vmatpush.msra.mxu0 %v1126
      %1193 = vmatpush.msra.mxu0 %v1124
      %1194 = vmatpush.msra.mxu0 %v1122
      %1195 = vmatpush.msra.mxu0 %v1120
      %1196 = vmatpush.msra.mxu0 %v1118
      %1197 = vmatpush.msra.mxu0 %v1116
      %1198 = vmatpush.msra.mxu0 %v1114
      %1199 = vmatpush.msra.mxu0 %v1112
      %1200 = vmatmul.f32.gmra.mxu0 %v1150
      %v1201 = vpop.f32.mrf.mxu0
      %v1202 = vadd.f32 %v1176, %v1201
      %1203 = vmatmul.f32.gmra.mxu0 %v1153
      %v1204 = vpop.f32.mrf.mxu0
      %v1205 = vadd.f32 %v1179, %v1204
      %1206 = vmatmul.f32.gmra.mxu0 %v1156
      %v1207 = vpop.f32.mrf.mxu0
      %v1208 = vadd.f32 %v1182, %v1207
      %1209 = vdwg.mxu0
      %1210 = vmatpush.msra.mxu0 %v1111
      %1211 = vmatpush.msra.mxu0 %v1109
      %1212 = vmatpush.msra.mxu0 %v1107
      %1213 = vmatpush.msra.mxu0 %v1105
      %1214 = vmatpush.msra.mxu0 %v1103
      %1215 = vmatpush.msra.mxu0 %v1101
      %1216 = vmatpush.msra.mxu0 %v1099
      %1217 = vmatpush.msra.mxu0 %v1097
      %1218 = vmatpush.msra.mxu0 %v1095
      %1219 = vmatpush.msra.mxu0 %v1093
      %1220 = vmatpush.msra.mxu0 %v1091
      %1221 = vmatpush.msra.mxu0 %v1089
      %1222 = vmatpush.msra.mxu0 %v1087
      %1223 = vmatpush.msra.mxu0 %v1085
      %1224 = vmatpush.msra.mxu0 %v1083
      %1225 = vmatpush.msra.mxu0 %v1081
      %1226 = vmatmul.f32.gmra.mxu0 %v1074
      %v1227 = vpop.f32.mrf.mxu0
      %v1228 = vadd.f32 %v1136, %v1227
      %1229 = vmatmul.f32.gmra.mxu0 %v1076
      %v1230 = vpop.f32.mrf.mxu0
      %v1231 = vadd.f32 %v1141, %v1230
      %1232 = vmatmul.f32.gmra.mxu0 %v1078
      %v1233 = vpop.f32.mrf.mxu0
      %v1234 = vadd.f32 %v1146, %v1233
      %1235 = vdwg.mxu0
      %1236 = vmatpush.msra.mxu0 0.0
      %1237 = vmatpush.msra.mxu0 0.0
      %1238 = vmatpush.msra.mxu0 0.0
      %1239 = vmatpush.msra.mxu0 0.0
      %1240 = vmatpush.msra.mxu0 0.0
      %1241 = vmatpush.msra.mxu0 0.0
      %1242 = vmatpush.msra.mxu0 0.0
      %1243 = vmatpush.msra.mxu0 %v1129
      %1244 = vmatpush.msra.mxu0 %v1127
      %1245 = vmatpush.msra.mxu0 %v1125
      %1246 = vmatpush.msra.mxu0 %v1123
      %1247 = vmatpush.msra.mxu0 %v1121
      %1248 = vmatpush.msra.mxu0 %v1119
      %1249 = vmatpush.msra.mxu0 %v1117
      %1250 = vmatpush.msra.mxu0 %v1115
      %1251 = vmatpush.msra.mxu0 %v1113
      %1252 = vmatmul.f32.gmra.mxu0 %v1150
      %v1253 = vpop.f32.mrf.mxu0
      %v1254 = vadd.f32 %v1228, %v1253
      %1255 = vmatmul.f32.gmra.mxu0 %v1153
      %v1256 = vpop.f32.mrf.mxu0
      %v1257 = vadd.f32 %v1231, %v1256
      %1258 = vmatmul.f32.gmra.mxu0 %v1156
      %v1259 = vpop.f32.mrf.mxu0
      %v1260 = vadd.f32 %v1234, %v1259
      %1261 = vdwg.mxu0
      %1262 = vst [vmem:[#allocation3] sm:$0xff] %v1202
      %1263 = vst [vmem:[#allocation3 + $0x8] sm:$0xff] %v1254
      %1264 = vst [vmem:[#allocation3 + $0x10] sm:$0xff] %v1205
      %1265 = vst [vmem:[#allocation3 + $0x18] sm:$0xff] %v1257
      %1266 = vst [vmem:[#allocation3 + $0x20] sm:$0xf] %v1208
      %1267 = vst [vmem:[#allocation3 + $0x28] sm:$0xf] %v1260
      %v1268 = vld [vmem:[#allocation3] sm:$0xff]
      %v1269 = vld [vmem:[#allocation3 + $0x8] sm:$0xff]
      %v1270 = vld [vmem:[#allocation3 + $0x10] sm:$0xff]
      %v1271 = vld [vmem:[#allocation3 + $0x18] sm:$0xff]
      %v1272 = vld [vmem:[#allocation3 + $0x20] sm:$0xf]
      %v1273 = vld [vmem:[#allocation3 + $0x28] sm:$0xf]
      %1274 = vst [vmem:[#allocation4] sm:$0xff] %v1268
      %vm1275 = vcmask 130048
      %1276 = vst.msk [vmem:[#allocation4 + $0x8] sm:$0xff] %vm1275, %v1269
      %1277 = vst [vmem:[#allocation4 + $0x10] sm:$0xff] %v1270
      %1278 = vst.msk [vmem:[#allocation4 + $0x18] sm:$0xff] %vm1275, %v1271
      %1279 = vst [vmem:[#allocation4 + $0x20] sm:$0xf] %v1272
      %vm1280 = vcmask 125952
      %1281 = vst.msk [vmem:[#allocation4 + $0x28] sm:$0xf] %vm1280, %v1273
      %v1282 = vld [vmem:[#allocation3] sm:$0xff]
      %v1283 = vld [vmem:[#allocation3 + $0x8] sm:$0xff]
      %v1284 = vld [vmem:[#allocation3 + $0x10] sm:$0xff]
      %v1285 = vld [vmem:[#allocation3 + $0x18] sm:$0xff]
      %v1286 = vld [vmem:[#allocation3 + $0x20] sm:$0xf]
      %v1287 = vld [vmem:[#allocation3 + $0x28] sm:$0xf]
      %v1294 = vrot.slane %v1282, 4
      %v1295 = vrot.slane %v1283, 4
      %v1296 = vrot.slane %v1284, 4
      %v1297 = vsel %vm292, %v1294, %v1296
      %v1298 = vrot.slane %v1285, 4
      %v1299 = vsel %vm292, %v1295, %v1298
      %v1300 = vrot.slane %v1286, 4
      %v1301 = vsel %vm292, %v1296, %v1300
      %v1302 = vrot.slane %v1287, 4
      %v1303 = vsel %vm292, %v1298, %v1302
      %1304 = vrot.lane.b32.xlu0 %v1294, 127
      %v1305 = vpop.permute.xlu0 %1304
      %1306 = vrot.lane.b32.xlu0 %v1295, 127
      %v1307 = vpop.permute.xlu0 %1306
      %1308 = vrot.lane.b32.xlu0 %v1297, 127
      %v1309 = vpop.permute.xlu0 %1308
      %1310 = vrot.lane.b32.xlu0 %v1299, 127
      %v1311 = vpop.permute.xlu0 %1310
      %1312 = vrot.lane.b32.xlu0 %v1301, 127
      %v1313 = vpop.permute.xlu0 %1312
      %1314 = vrot.lane.b32.xlu0 %v1303, 127
      %v1315 = vpop.permute.xlu0 %1314
      %v1316 = vsel %vm267, %v1305, %v1307
      %v1317 = vsel %vm267, %v1309, %v1311
      %v1318 = vsel %vm267, %v1313, %v1315
      %1325 = vst [vmem:[#allocation4 + $0x20] sm:$0xf0] %v1316
      %vm1326 = vcmask 130052
      %1327 = vst.msk [vmem:[#allocation4 + $0x28] sm:$0xf0] %vm1326, %v1307
      %1328 = vst [vmem:[#allocation4 + $0x30] sm:$0xff] %v1317
      %1329 = vst.msk [vmem:[#allocation4 + $0x38] sm:$0xff] %vm1275, %v1311
      %1330 = vst [vmem:[#allocation4 + $0x40] sm:$0xff] %v1318
      %1331 = vst.msk [vmem:[#allocation4 + $0x48] sm:$0xff] %vm1275, %v1315
      %v1332 = vld [vmem:[#allocation3] sm:$0xff]
      %v1333 = vld [vmem:[#allocation3 + $0x8] sm:$0xff]
      %v1334 = vld [vmem:[#allocation3 + $0x10] sm:$0xff]
      %v1335 = vld [vmem:[#allocation3 + $0x18] sm:$0xff]
      %v1336 = vld [vmem:[#allocation3 + $0x20] sm:$0xf]
      %v1337 = vld [vmem:[#allocation3 + $0x28] sm:$0xf]
      %1344 = vrot.lane.b32.xlu0 %v1332, 126
      %v1345 = vpop.permute.xlu0 %1344
      %1346 = vrot.lane.b32.xlu0 %v1333, 126
      %v1347 = vpop.permute.xlu0 %1346
      %1348 = vrot.lane.b32.xlu0 %v1334, 126
      %v1349 = vpop.permute.xlu0 %1348
      %1350 = vrot.lane.b32.xlu0 %v1335, 126
      %v1351 = vpop.permute.xlu0 %1350
      %1352 = vrot.lane.b32.xlu0 %v1336, 126
      %v1353 = vpop.permute.xlu0 %1352
      %1354 = vrot.lane.b32.xlu0 %v1337, 126
      %v1355 = vpop.permute.xlu0 %1354
      %v1356 = vsel %vm314, %v1345, %v1347
      %v1357 = vsel %vm314, %v1349, %v1351
      %v1358 = vsel %vm314, %v1353, %v1355
      %1365 = vst [vmem:[#allocation4 + $0x50] sm:$0xff] %v1356
      %1366 = vst.msk [vmem:[#allocation4 + $0x58] sm:$0xff] %vm1275, %v1347
      %1367 = vst [vmem:[#allocation4 + $0x60] sm:$0xff] %v1357
      %1368 = vst.msk [vmem:[#allocation4 + $0x68] sm:$0xff] %vm1275, %v1351
      %1369 = vst [vmem:[#allocation4 + $0x70] sm:$0xf] %v1358
      %1370 = vst.msk [vmem:[#allocation4 + $0x78] sm:$0xf] %vm1280, %v1355
      %v1371 = vld [vmem:[#allocation3] sm:$0xff]
      %v1372 = vld [vmem:[#allocation3 + $0x8] sm:$0xff]
      %v1373 = vld [vmem:[#allocation3 + $0x10] sm:$0xff]
      %v1374 = vld [vmem:[#allocation3 + $0x18] sm:$0xff]
      %v1375 = vld [vmem:[#allocation3 + $0x20] sm:$0xf]
      %v1376 = vld [vmem:[#allocation3 + $0x28] sm:$0xf]
      %v1383 = vrot.slane %v1371, 4
      %v1384 = vrot.slane %v1372, 4
      %v1385 = vrot.slane %v1373, 4
      %v1386 = vsel %vm292, %v1383, %v1385
      %v1387 = vrot.slane %v1374, 4
      %v1388 = vsel %vm292, %v1384, %v1387
      %v1389 = vrot.slane %v1375, 4
      %v1390 = vsel %vm292, %v1385, %v1389
      %v1391 = vrot.slane %v1376, 4
      %v1392 = vsel %vm292, %v1387, %v1391
      %1393 = vrot.lane.b32.xlu0 %v1383, 125
      %v1394 = vpop.permute.xlu0 %1393
      %1395 = vrot.lane.b32.xlu0 %v1384, 125
      %v1396 = vpop.permute.xlu0 %1395
      %1397 = vrot.lane.b32.xlu0 %v1386, 125
      %v1398 = vpop.permute.xlu0 %1397
      %1399 = vrot.lane.b32.xlu0 %v1388, 125
      %v1400 = vpop.permute.xlu0 %1399
      %1401 = vrot.lane.b32.xlu0 %v1390, 125
      %v1402 = vpop.permute.xlu0 %1401
      %1403 = vrot.lane.b32.xlu0 %v1392, 125
      %v1404 = vpop.permute.xlu0 %1403
      %v1405 = vsel %vm361, %v1394, %v1396
      %v1406 = vsel %vm361, %v1398, %v1400
      %v1407 = vsel %vm361, %v1402, %v1404
      %1414 = vst [vmem:[#allocation4 + $0x70] sm:$0xf0] %v1405
      %1415 = vst.msk [vmem:[#allocation4 + $0x78] sm:$0xf0] %vm1326, %v1396
      %1416 = vst [vmem:[#allocation4 + $0x80] sm:$0xff] %v1406
      %1417 = vst.msk [vmem:[#allocation4 + $0x88] sm:$0xff] %vm1275, %v1400
      %1418 = vst [vmem:[#allocation4 + $0x90] sm:$0xff] %v1407
      %1419 = vst.msk [vmem:[#allocation4 + $0x98] sm:$0xff] %vm1275, %v1404
      %v1420 = vld [vmem:[#allocation3] sm:$0xff]
      %v1421 = vld [vmem:[#allocation3 + $0x8] sm:$0xff]
      %v1422 = vld [vmem:[#allocation3 + $0x10] sm:$0xff]
      %v1423 = vld [vmem:[#allocation3 + $0x18] sm:$0xff]
      %v1424 = vld [vmem:[#allocation3 + $0x20] sm:$0xf]
      %v1425 = vld [vmem:[#allocation3 + $0x28] sm:$0xf]
      %1432 = vrot.lane.b32.xlu0 %v1420, 124
      %v1433 = vpop.permute.xlu0 %1432
      %1434 = vrot.lane.b32.xlu0 %v1421, 124
      %v1435 = vpop.permute.xlu0 %1434
      %1436 = vrot.lane.b32.xlu0 %v1422, 124
      %v1437 = vpop.permute.xlu0 %1436
      %1438 = vrot.lane.b32.xlu0 %v1423, 124
      %v1439 = vpop.permute.xlu0 %1438
      %1440 = vrot.lane.b32.xlu0 %v1424, 124
      %v1441 = vpop.permute.xlu0 %1440
      %1442 = vrot.lane.b32.xlu0 %v1425, 124
      %v1443 = vpop.permute.xlu0 %1442
      %vm1444 = vcmask 1014784
      %v1445 = vsel %vm1444, %v1433, %v1435
      %v1446 = vsel %vm1444, %v1437, %v1439
      %v1447 = vsel %vm1444, %v1441, %v1443
      %1454 = vst [vmem:[#allocation4 + $0xa0] sm:$0xff] %v1445
      %1455 = vst.msk [vmem:[#allocation4 + $0xa8] sm:$0xff] %vm1275, %v1435
      %1456 = vst [vmem:[#allocation4 + $0xb0] sm:$0xff] %v1446
      %1457 = vst.msk [vmem:[#allocation4 + $0xb8] sm:$0xff] %vm1275, %v1439
      %1458 = vst [vmem:[#allocation4 + $0xc0] sm:$0xf] %v1447
      %1459 = vst.msk [vmem:[#allocation4 + $0xc8] sm:$0xf] %vm1280, %v1443
      %v1460 = vld [vmem:[#allocation3] sm:$0xff]
      %v1461 = vld [vmem:[#allocation3 + $0x8] sm:$0xff]
      %v1462 = vld [vmem:[#allocation3 + $0x10] sm:$0xff]
      %v1463 = vld [vmem:[#allocation3 + $0x18] sm:$0xff]
      %v1464 = vld [vmem:[#allocation3 + $0x20] sm:$0xf]
      %v1465 = vld [vmem:[#allocation3 + $0x28] sm:$0xf]
      %v1472 = vrot.slane %v1460, 4
      %v1473 = vrot.slane %v1461, 4
      %v1474 = vrot.slane %v1462, 4
      %v1475 = vsel %vm292, %v1472, %v1474
      %v1476 = vrot.slane %v1463, 4
      %v1477 = vsel %vm292, %v1473, %v1476
      %v1478 = vrot.slane %v1464, 4
      %v1479 = vsel %vm292, %v1474, %v1478
      %v1480 = vrot.slane %v1465, 4
      %v1481 = vsel %vm292, %v1476, %v1480
      %1482 = vrot.lane.b32.xlu0 %v1472, 123
      %v1483 = vpop.permute.xlu0 %1482
      %1484 = vrot.lane.b32.xlu0 %v1473, 123
      %v1485 = vpop.permute.xlu0 %1484
      %1486 = vrot.lane.b32.xlu0 %v1475, 123
      %v1487 = vpop.permute.xlu0 %1486
      %1488 = vrot.lane.b32.xlu0 %v1477, 123
      %v1489 = vpop.permute.xlu0 %1488
      %1490 = vrot.lane.b32.xlu0 %v1479, 123
      %v1491 = vpop.permute.xlu0 %1490
      %1492 = vrot.lane.b32.xlu0 %v1481, 123
      %v1493 = vpop.permute.xlu0 %1492
      %vm1494 = vcmask 1006592
      %v1495 = vsel %vm1494, %v1483, %v1485
      %v1496 = vsel %vm1494, %v1487, %v1489
      %v1497 = vsel %vm1494, %v1491, %v1493
      %1504 = vst [vmem:[#allocation4 + $0xc0] sm:$0xf0] %v1495
      %1505 = vst.msk [vmem:[#allocation4 + $0xc8] sm:$0xf0] %vm1326, %v1485
      %1506 = vst [vmem:[#allocation4 + $0xd0] sm:$0xff] %v1496
      %1507 = vst.msk [vmem:[#allocation4 + $0xd8] sm:$0xff] %vm1275, %v1489
      %1508 = vst [vmem:[#allocation4 + $0xe0] sm:$0xff] %v1497
      %1509 = vst.msk [vmem:[#allocation4 + $0xe8] sm:$0xff] %vm1275, %v1493
      %v1510 = vld [vmem:[#allocation3] sm:$0xff]
      %v1511 = vld [vmem:[#allocation3 + $0x8] sm:$0xff]
      %v1512 = vld [vmem:[#allocation3 + $0x10] sm:$0xff]
      %v1513 = vld [vmem:[#allocation3 + $0x18] sm:$0xff]
      %v1514 = vld [vmem:[#allocation3 + $0x20] sm:$0xf]
      %v1515 = vld [vmem:[#allocation3 + $0x28] sm:$0xf]
      %1522 = vrot.lane.b32.xlu0 %v1510, 112
      %v1523 = vpop.permute.xlu0 %1522
      %1524 = vrot.lane.b32.xlu0 %v1511, 112
      %v1525 = vpop.permute.xlu0 %1524
      %1526 = vrot.lane.b32.xlu0 %v1512, 112
      %v1527 = vpop.permute.xlu0 %1526
      %1528 = vrot.lane.b32.xlu0 %v1513, 112
      %v1529 = vpop.permute.xlu0 %1528
      %1530 = vrot.lane.b32.xlu0 %v1514, 112
      %v1531 = vpop.permute.xlu0 %1530
      %1532 = vrot.lane.b32.xlu0 %v1515, 112
      %v1533 = vpop.permute.xlu0 %1532
      %v1534 = vsel %vm398, %v1523, %v1525
      %v1535 = vsel %vm398, %v1527, %v1529
      %v1536 = vsel %vm398, %v1531, %v1533
      %1543 = vst [vmem:[#allocation4 + $0xf0] sm:$0xff] %v1534
      %1544 = vst.msk [vmem:[#allocation4 + $0xf8] sm:$0xff] %vm1275, %v1525
      %1545 = vst [vmem:[#allocation4 + $0x100] sm:$0xff] %v1535
      %1546 = vst.msk [vmem:[#allocation4 + $0x108] sm:$0xff] %vm1275, %v1529
      %1547 = vst [vmem:[#allocation4 + $0x110] sm:$0xf] %v1536
      %1548 = vst.msk [vmem:[#allocation4 + $0x118] sm:$0xf] %vm1280, %v1533
      %v1549 = vld [vmem:[#allocation3] sm:$0xff]
      %v1550 = vld [vmem:[#allocation3 + $0x8] sm:$0xff]
      %v1551 = vld [vmem:[#allocation3 + $0x10] sm:$0xff]
      %v1552 = vld [vmem:[#allocation3 + $0x18] sm:$0xff]
      %v1553 = vld [vmem:[#allocation3 + $0x20] sm:$0xf]
      %v1554 = vld [vmem:[#allocation3 + $0x28] sm:$0xf]
      %v1561 = vrot.slane %v1549, 4
      %v1562 = vrot.slane %v1550, 4
      %v1563 = vrot.slane %v1551, 4
      %v1564 = vsel %vm292, %v1561, %v1563
      %v1565 = vrot.slane %v1552, 4
      %v1566 = vsel %vm292, %v1562, %v1565
      %v1567 = vrot.slane %v1553, 4
      %v1568 = vsel %vm292, %v1563, %v1567
      %v1569 = vrot.slane %v1554, 4
      %v1570 = vsel %vm292, %v1565, %v1569
      %1571 = vrot.lane.b32.xlu0 %v1561, 111
      %v1572 = vpop.permute.xlu0 %1571
      %1573 = vrot.lane.b32.xlu0 %v1562, 111
      %v1574 = vpop.permute.xlu0 %1573
      %1575 = vrot.lane.b32.xlu0 %v1564, 111
      %v1576 = vpop.permute.xlu0 %1575
      %1577 = vrot.lane.b32.xlu0 %v1566, 111
      %v1578 = vpop.permute.xlu0 %1577
      %1579 = vrot.lane.b32.xlu0 %v1568, 111
      %v1580 = vpop.permute.xlu0 %1579
      %1581 = vrot.lane.b32.xlu0 %v1570, 111
      %v1582 = vpop.permute.xlu0 %1581
      %v1583 = vsel %vm444, %v1572, %v1574
      %v1584 = vsel %vm444, %v1576, %v1578
      %v1585 = vsel %vm444, %v1580, %v1582
      %1592 = vst [vmem:[#allocation4 + $0x110] sm:$0xf0] %v1583
      %1593 = vst.msk [vmem:[#allocation4 + $0x118] sm:$0xf0] %vm1326, %v1574
      %1594 = vst [vmem:[#allocation4 + $0x120] sm:$0xff] %v1584
      %1595 = vst.msk [vmem:[#allocation4 + $0x128] sm:$0xff] %vm1275, %v1578
      %1596 = vst [vmem:[#allocation4 + $0x130] sm:$0xff] %v1585
      %1597 = vst.msk [vmem:[#allocation4 + $0x138] sm:$0xff] %vm1275, %v1582
      %v1598 = vld [vmem:[#allocation3] sm:$0xff]
      %v1599 = vld [vmem:[#allocation3 + $0x8] sm:$0xff]
      %v1600 = vld [vmem:[#allocation3 + $0x10] sm:$0xff]
      %v1601 = vld [vmem:[#allocation3 + $0x18] sm:$0xff]
      %v1602 = vld [vmem:[#allocation3 + $0x20] sm:$0xf]
      %v1603 = vld [vmem:[#allocation3 + $0x28] sm:$0xf]
      %1610 = vrot.lane.b32.xlu0 %v1598, 110
      %v1611 = vpop.permute.xlu0 %1610
      %1612 = vrot.lane.b32.xlu0 %v1599, 110
      %v1613 = vpop.permute.xlu0 %1612
      %1614 = vrot.lane.b32.xlu0 %v1600, 110
      %v1615 = vpop.permute.xlu0 %1614
      %1616 = vrot.lane.b32.xlu0 %v1601, 110
      %v1617 = vpop.permute.xlu0 %1616
      %1618 = vrot.lane.b32.xlu0 %v1602, 110
      %v1619 = vpop.permute.xlu0 %1618
      %1620 = vrot.lane.b32.xlu0 %v1603, 110
      %v1621 = vpop.permute.xlu0 %1620
      %v1622 = vsel %vm490, %v1611, %v1613
      %v1623 = vsel %vm490, %v1615, %v1617
      %v1624 = vsel %vm490, %v1619, %v1621
      %1631 = vst [vmem:[#allocation4 + $0x140] sm:$0xff] %v1622
      %1632 = vst.msk [vmem:[#allocation4 + $0x148] sm:$0xff] %vm1275, %v1613
      %1633 = vst [vmem:[#allocation4 + $0x150] sm:$0xff] %v1623
      %1634 = vst.msk [vmem:[#allocation4 + $0x158] sm:$0xff] %vm1275, %v1617
      %1635 = vst [vmem:[#allocation4 + $0x160] sm:$0xf] %v1624
      %1636 = vst.msk [vmem:[#allocation4 + $0x168] sm:$0xf] %vm1280, %v1621
      %v1637 = vld [vmem:[#allocation3] sm:$0xff]
      %v1638 = vld [vmem:[#allocation3 + $0x8] sm:$0xff]
      %v1639 = vld [vmem:[#allocation3 + $0x10] sm:$0xff]
      %v1640 = vld [vmem:[#allocation3 + $0x18] sm:$0xff]
      %v1641 = vld [vmem:[#allocation3 + $0x20] sm:$0xf]
      %v1642 = vld [vmem:[#allocation3 + $0x28] sm:$0xf]
      %v1649 = vrot.slane %v1637, 4
      %v1650 = vrot.slane %v1638, 4
      %v1651 = vrot.slane %v1639, 4
      %v1652 = vsel %vm292, %v1649, %v1651
      %v1653 = vrot.slane %v1640, 4
      %v1654 = vsel %vm292, %v1650, %v1653
      %v1655 = vrot.slane %v1641, 4
      %v1656 = vsel %vm292, %v1651, %v1655
      %v1657 = vrot.slane %v1642, 4
      %v1658 = vsel %vm292, %v1653, %v1657
      %1659 = vrot.lane.b32.xlu0 %v1649, 109
      %v1660 = vpop.permute.xlu0 %1659
      %1661 = vrot.lane.b32.xlu0 %v1650, 109
      %v1662 = vpop.permute.xlu0 %1661
      %1663 = vrot.lane.b32.xlu0 %v1652, 109
      %v1664 = vpop.permute.xlu0 %1663
      %1665 = vrot.lane.b32.xlu0 %v1654, 109
      %v1666 = vpop.permute.xlu0 %1665
      %1667 = vrot.lane.b32.xlu0 %v1656, 109
      %v1668 = vpop.permute.xlu0 %1667
      %1669 = vrot.lane.b32.xlu0 %v1658, 109
      %v1670 = vpop.permute.xlu0 %1669
      %v1671 = vsel %vm536, %v1660, %v1662
      %v1672 = vsel %vm536, %v1664, %v1666
      %v1673 = vsel %vm536, %v1668, %v1670
      %1680 = vst [vmem:[#allocation4 + $0x160] sm:$0xf0] %v1671
      %1681 = vst.msk [vmem:[#allocation4 + $0x168] sm:$0xf0] %vm1326, %v1662
      %1682 = vst [vmem:[#allocation4 + $0x170] sm:$0xff] %v1672
      %1683 = vst.msk [vmem:[#allocation4 + $0x178] sm:$0xff] %vm1275, %v1666
      %1684 = vst [vmem:[#allocation4 + $0x180] sm:$0xff] %v1673
      %1685 = vst.msk [vmem:[#allocation4 + $0x188] sm:$0xff] %vm1275, %v1670
      %v1686 = vld [vmem:[#allocation3] sm:$0xff]
      %v1687 = vld [vmem:[#allocation3 + $0x8] sm:$0xff]
      %v1688 = vld [vmem:[#allocation3 + $0x10] sm:$0xff]
      %v1689 = vld [vmem:[#allocation3 + $0x18] sm:$0xff]
      %v1690 = vld [vmem:[#allocation3 + $0x20] sm:$0xf]
      %v1691 = vld [vmem:[#allocation3 + $0x28] sm:$0xf]
      %1698 = vrot.lane.b32.xlu0 %v1686, 108
      %v1699 = vpop.permute.xlu0 %1698
      %1700 = vrot.lane.b32.xlu0 %v1687, 108
      %v1701 = vpop.permute.xlu0 %1700
      %1702 = vrot.lane.b32.xlu0 %v1688, 108
      %v1703 = vpop.permute.xlu0 %1702
      %1704 = vrot.lane.b32.xlu0 %v1689, 108
      %v1705 = vpop.permute.xlu0 %1704
      %1706 = vrot.lane.b32.xlu0 %v1690, 108
      %v1707 = vpop.permute.xlu0 %1706
      %1708 = vrot.lane.b32.xlu0 %v1691, 108
      %v1709 = vpop.permute.xlu0 %1708
      %vm1710 = vcmask 883712
      %v1711 = vsel %vm1710, %v1699, %v1701
      %v1712 = vsel %vm1710, %v1703, %v1705
      %v1713 = vsel %vm1710, %v1707, %v1709
      %1720 = vst [vmem:[#allocation4 + $0x190] sm:$0xff] %v1711
      %1721 = vst.msk [vmem:[#allocation4 + $0x198] sm:$0xff] %vm1275, %v1701
      %1722 = vst [vmem:[#allocation4 + $0x1a0] sm:$0xff] %v1712
      %1723 = vst.msk [vmem:[#allocation4 + $0x1a8] sm:$0xff] %vm1275, %v1705
      %1724 = vst [vmem:[#allocation4 + $0x1b0] sm:$0xf] %v1713
      %1725 = vst.msk [vmem:[#allocation4 + $0x1b8] sm:$0xf] %vm1280, %v1709
      %v1726 = vld [vmem:[#allocation3] sm:$0xff]
      %v1727 = vld [vmem:[#allocation3 + $0x8] sm:$0xff]
      %v1728 = vld [vmem:[#allocation3 + $0x10] sm:$0xff]
      %v1729 = vld [vmem:[#allocation3 + $0x18] sm:$0xff]
      %v1730 = vld [vmem:[#allocation3 + $0x20] sm:$0xf]
      %v1731 = vld [vmem:[#allocation3 + $0x28] sm:$0xf]
      %v1738 = vrot.slane %v1726, 4
      %v1739 = vrot.slane %v1727, 4
      %v1740 = vrot.slane %v1728, 4
      %v1741 = vsel %vm292, %v1738, %v1740
      %v1742 = vrot.slane %v1729, 4
      %v1743 = vsel %vm292, %v1739, %v1742
      %v1744 = vrot.slane %v1730, 4
      %v1745 = vsel %vm292, %v1740, %v1744
      %v1746 = vrot.slane %v1731, 4
      %v1747 = vsel %vm292, %v1742, %v1746
      %1748 = vrot.lane.b32.xlu0 %v1738, 107
      %v1749 = vpop.permute.xlu0 %1748
      %1750 = vrot.lane.b32.xlu0 %v1739, 107
      %v1751 = vpop.permute.xlu0 %1750
      %1752 = vrot.lane.b32.xlu0 %v1741, 107
      %v1753 = vpop.permute.xlu0 %1752
      %1754 = vrot.lane.b32.xlu0 %v1743, 107
      %v1755 = vpop.permute.xlu0 %1754
      %1756 = vrot.lane.b32.xlu0 %v1745, 107
      %v1757 = vpop.permute.xlu0 %1756
      %1758 = vrot.lane.b32.xlu0 %v1747, 107
      %v1759 = vpop.permute.xlu0 %1758
      %vm1760 = vcmask 875520
      %v1761 = vsel %vm1760, %v1749, %v1751
      %v1762 = vsel %vm1760, %v1753, %v1755
      %v1763 = vsel %vm1760, %v1757, %v1759
      %1770 = vst [vmem:[#allocation4 + $0x1b0] sm:$0xf0] %v1761
      %1771 = vst.msk [vmem:[#allocation4 + $0x1b8] sm:$0xf0] %vm1326, %v1751
      %1772 = vst [vmem:[#allocation4 + $0x1c0] sm:$0xff] %v1762
      %1773 = vst.msk [vmem:[#allocation4 + $0x1c8] sm:$0xff] %vm1275, %v1755
      %1774 = vst [vmem:[#allocation4 + $0x1d0] sm:$0xff] %v1763
      %1775 = vst.msk [vmem:[#allocation4 + $0x1d8] sm:$0xff] %vm1275, %v1759
      %v1776 = vld [vmem:[#allocation3] sm:$0xff]
      %v1777 = vld [vmem:[#allocation3 + $0x8] sm:$0xff]
      %v1778 = vld [vmem:[#allocation3 + $0x10] sm:$0xff]
      %v1779 = vld [vmem:[#allocation3 + $0x18] sm:$0xff]
      %v1780 = vld [vmem:[#allocation3 + $0x20] sm:$0xf]
      %v1781 = vld [vmem:[#allocation3 + $0x28] sm:$0xf]
      %1788 = vrot.lane.b32.xlu0 %v1776, 96
      %v1789 = vpop.permute.xlu0 %1788
      %1790 = vrot.lane.b32.xlu0 %v1777, 96
      %v1791 = vpop.permute.xlu0 %1790
      %1792 = vrot.lane.b32.xlu0 %v1778, 96
      %v1793 = vpop.permute.xlu0 %1792
      %1794 = vrot.lane.b32.xlu0 %v1779, 96
      %v1795 = vpop.permute.xlu0 %1794
      %1796 = vrot.lane.b32.xlu0 %v1780, 96
      %v1797 = vpop.permute.xlu0 %1796
      %1798 = vrot.lane.b32.xlu0 %v1781, 96
      %v1799 = vpop.permute.xlu0 %1798
      %v1800 = vsel %vm573, %v1789, %v1791
      %v1801 = vsel %vm573, %v1793, %v1795
      %v1802 = vsel %vm573, %v1797, %v1799
      %1809 = vst [vmem:[#allocation4 + $0x1e0] sm:$0xff] %v1800
      %1810 = vst.msk [vmem:[#allocation4 + $0x1e8] sm:$0xff] %vm1275, %v1791
      %1811 = vst [vmem:[#allocation4 + $0x1f0] sm:$0xff] %v1801
      %1812 = vst.msk [vmem:[#allocation4 + $0x1f8] sm:$0xff] %vm1275, %v1795
      %1813 = vst [vmem:[#allocation4 + $0x200] sm:$0xf] %v1802
      %1814 = vst.msk [vmem:[#allocation4 + $0x208] sm:$0xf] %vm1280, %v1799
      %v1815 = vld [vmem:[#allocation3] sm:$0xff]
      %v1816 = vld [vmem:[#allocation3 + $0x8] sm:$0xff]
      %v1817 = vld [vmem:[#allocation3 + $0x10] sm:$0xff]
      %v1818 = vld [vmem:[#allocation3 + $0x18] sm:$0xff]
      %v1819 = vld [vmem:[#allocation3 + $0x20] sm:$0xf]
      %v1820 = vld [vmem:[#allocation3 + $0x28] sm:$0xf]
      %v1827 = vrot.slane %v1815, 4
      %v1828 = vrot.slane %v1816, 4
      %v1829 = vrot.slane %v1817, 4
      %v1830 = vsel %vm292, %v1827, %v1829
      %v1831 = vrot.slane %v1818, 4
      %v1832 = vsel %vm292, %v1828, %v1831
      %v1833 = vrot.slane %v1819, 4
      %v1834 = vsel %vm292, %v1829, %v1833
      %v1835 = vrot.slane %v1820, 4
      %v1836 = vsel %vm292, %v1831, %v1835
      %1837 = vrot.lane.b32.xlu0 %v1827, 95
      %v1838 = vpop.permute.xlu0 %1837
      %1839 = vrot.lane.b32.xlu0 %v1828, 95
      %v1840 = vpop.permute.xlu0 %1839
      %1841 = vrot.lane.b32.xlu0 %v1830, 95
      %v1842 = vpop.permute.xlu0 %1841
      %1843 = vrot.lane.b32.xlu0 %v1832, 95
      %v1844 = vpop.permute.xlu0 %1843
      %1845 = vrot.lane.b32.xlu0 %v1834, 95
      %v1846 = vpop.permute.xlu0 %1845
      %1847 = vrot.lane.b32.xlu0 %v1836, 95
      %v1848 = vpop.permute.xlu0 %1847
      %v1849 = vsel %vm619, %v1838, %v1840
      %v1850 = vsel %vm619, %v1842, %v1844
      %v1851 = vsel %vm619, %v1846, %v1848
      %1858 = vst [vmem:[#allocation4 + $0x200] sm:$0xf0] %v1849
      %1859 = vst.msk [vmem:[#allocation4 + $0x208] sm:$0xf0] %vm1326, %v1840
      %1860 = vst [vmem:[#allocation4 + $0x210] sm:$0xff] %v1850
      %1861 = vst.msk [vmem:[#allocation4 + $0x218] sm:$0xff] %vm1275, %v1844
      %1862 = vst [vmem:[#allocation4 + $0x220] sm:$0xff] %v1851
      %1863 = vst.msk [vmem:[#allocation4 + $0x228] sm:$0xff] %vm1275, %v1848
      %v1864 = vld [vmem:[#allocation3] sm:$0xff]
      %v1865 = vld [vmem:[#allocation3 + $0x8] sm:$0xff]
      %v1866 = vld [vmem:[#allocation3 + $0x10] sm:$0xff]
      %v1867 = vld [vmem:[#allocation3 + $0x18] sm:$0xff]
      %v1868 = vld [vmem:[#allocation3 + $0x20] sm:$0xf]
      %v1869 = vld [vmem:[#allocation3 + $0x28] sm:$0xf]
      %1876 = vrot.lane.b32.xlu0 %v1864, 94
      %v1877 = vpop.permute.xlu0 %1876
      %1878 = vrot.lane.b32.xlu0 %v1865, 94
      %v1879 = vpop.permute.xlu0 %1878
      %1880 = vrot.lane.b32.xlu0 %v1866, 94
      %v1881 = vpop.permute.xlu0 %1880
      %1882 = vrot.lane.b32.xlu0 %v1867, 94
      %v1883 = vpop.permute.xlu0 %1882
      %1884 = vrot.lane.b32.xlu0 %v1868, 94
      %v1885 = vpop.permute.xlu0 %1884
      %1886 = vrot.lane.b32.xlu0 %v1869, 94
      %v1887 = vpop.permute.xlu0 %1886
      %v1888 = vsel %vm665, %v1877, %v1879
      %v1889 = vsel %vm665, %v1881, %v1883
      %v1890 = vsel %vm665, %v1885, %v1887
      %1897 = vst [vmem:[#allocation4 + $0x230] sm:$0xff] %v1888
      %1898 = vst.msk [vmem:[#allocation4 + $0x238] sm:$0xff] %vm1275, %v1879
      %1899 = vst [vmem:[#allocation4 + $0x240] sm:$0xff] %v1889
      %1900 = vst.msk [vmem:[#allocation4 + $0x248] sm:$0xff] %vm1275, %v1883
      %1901 = vst [vmem:[#allocation4 + $0x250] sm:$0xf] %v1890
      %1902 = vst.msk [vmem:[#allocation4 + $0x258] sm:$0xf] %vm1280, %v1887
      %v1903 = vld [vmem:[#allocation3] sm:$0xff]
      %v1904 = vld [vmem:[#allocation3 + $0x8] sm:$0xff]
      %v1905 = vld [vmem:[#allocation3 + $0x10] sm:$0xff]
      %v1906 = vld [vmem:[#allocation3 + $0x18] sm:$0xff]
      %v1907 = vld [vmem:[#allocation3 + $0x20] sm:$0xf]
      %v1908 = vld [vmem:[#allocation3 + $0x28] sm:$0xf]
      %v1915 = vrot.slane %v1903, 4
      %v1916 = vrot.slane %v1904, 4
      %v1917 = vrot.slane %v1905, 4
      %v1918 = vsel %vm292, %v1915, %v1917
      %v1919 = vrot.slane %v1906, 4
      %v1920 = vsel %vm292, %v1916, %v1919
      %v1921 = vrot.slane %v1907, 4
      %v1922 = vsel %vm292, %v1917, %v1921
      %v1923 = vrot.slane %v1908, 4
      %v1924 = vsel %vm292, %v1919, %v1923
      %1925 = vrot.lane.b32.xlu0 %v1915, 93
      %v1926 = vpop.permute.xlu0 %1925
      %1927 = vrot.lane.b32.xlu0 %v1916, 93
      %v1928 = vpop.permute.xlu0 %1927
      %1929 = vrot.lane.b32.xlu0 %v1918, 93
      %v1930 = vpop.permute.xlu0 %1929
      %1931 = vrot.lane.b32.xlu0 %v1920, 93
      %v1932 = vpop.permute.xlu0 %1931
      %1933 = vrot.lane.b32.xlu0 %v1922, 93
      %v1934 = vpop.permute.xlu0 %1933
      %1935 = vrot.lane.b32.xlu0 %v1924, 93
      %v1936 = vpop.permute.xlu0 %1935
      %v1937 = vsel %vm711, %v1926, %v1928
      %v1938 = vsel %vm711, %v1930, %v1932
      %v1939 = vsel %vm711, %v1934, %v1936
      %1946 = vst [vmem:[#allocation4 + $0x250] sm:$0xf0] %v1937
      %1947 = vst.msk [vmem:[#allocation4 + $0x258] sm:$0xf0] %vm1326, %v1928
      %1948 = vst [vmem:[#allocation4 + $0x260] sm:$0xff] %v1938
      %1949 = vst.msk [vmem:[#allocation4 + $0x268] sm:$0xff] %vm1275, %v1932
      %1950 = vst [vmem:[#allocation4 + $0x270] sm:$0xff] %v1939
      %1951 = vst.msk [vmem:[#allocation4 + $0x278] sm:$0xff] %vm1275, %v1936
      %v1952 = vld [vmem:[#allocation3] sm:$0xff]
      %v1953 = vld [vmem:[#allocation3 + $0x8] sm:$0xff]
      %v1954 = vld [vmem:[#allocation3 + $0x10] sm:$0xff]
      %v1955 = vld [vmem:[#allocation3 + $0x18] sm:$0xff]
      %v1956 = vld [vmem:[#allocation3 + $0x20] sm:$0xf]
      %v1957 = vld [vmem:[#allocation3 + $0x28] sm:$0xf]
      %1964 = vrot.lane.b32.xlu0 %v1952, 92
      %v1965 = vpop.permute.xlu0 %1964
      %1966 = vrot.lane.b32.xlu0 %v1953, 92
      %v1967 = vpop.permute.xlu0 %1966
      %1968 = vrot.lane.b32.xlu0 %v1954, 92
      %v1969 = vpop.permute.xlu0 %1968
      %1970 = vrot.lane.b32.xlu0 %v1955, 92
      %v1971 = vpop.permute.xlu0 %1970
      %1972 = vrot.lane.b32.xlu0 %v1956, 92
      %v1973 = vpop.permute.xlu0 %1972
      %1974 = vrot.lane.b32.xlu0 %v1957, 92
      %v1975 = vpop.permute.xlu0 %1974
      %vm1976 = vcmask 752640
      %v1977 = vsel %vm1976, %v1965, %v1967
      %v1978 = vsel %vm1976, %v1969, %v1971
      %v1979 = vsel %vm1976, %v1973, %v1975
      %1986 = vst [vmem:[#allocation4 + $0x280] sm:$0xff] %v1977
      %1987 = vst.msk [vmem:[#allocation4 + $0x288] sm:$0xff] %vm1275, %v1967
      %1988 = vst [vmem:[#allocation4 + $0x290] sm:$0xff] %v1978
      %1989 = vst.msk [vmem:[#allocation4 + $0x298] sm:$0xff] %vm1275, %v1971
      %1990 = vst [vmem:[#allocation4 + $0x2a0] sm:$0xf] %v1979
      %1991 = vst.msk [vmem:[#allocation4 + $0x2a8] sm:$0xf] %vm1280, %v1975
      %v1992 = vld [vmem:[#allocation3] sm:$0xff]
      %v1993 = vld [vmem:[#allocation3 + $0x8] sm:$0xff]
      %v1994 = vld [vmem:[#allocation3 + $0x10] sm:$0xff]
      %v1995 = vld [vmem:[#allocation3 + $0x18] sm:$0xff]
      %v1996 = vld [vmem:[#allocation3 + $0x20] sm:$0xf]
      %v1997 = vld [vmem:[#allocation3 + $0x28] sm:$0xf]
      %v2004 = vrot.slane %v1992, 4
      %v2005 = vrot.slane %v1993, 4
      %v2006 = vrot.slane %v1994, 4
      %v2007 = vsel %vm292, %v2004, %v2006
      %v2008 = vrot.slane %v1995, 4
      %v2009 = vsel %vm292, %v2005, %v2008
      %v2010 = vrot.slane %v1996, 4
      %v2011 = vsel %vm292, %v2006, %v2010
      %v2012 = vrot.slane %v1997, 4
      %v2013 = vsel %vm292, %v2008, %v2012
      %2014 = vrot.lane.b32.xlu0 %v2004, 91
      %v2015 = vpop.permute.xlu0 %2014
      %2016 = vrot.lane.b32.xlu0 %v2005, 91
      %v2017 = vpop.permute.xlu0 %2016
      %2018 = vrot.lane.b32.xlu0 %v2007, 91
      %v2019 = vpop.permute.xlu0 %2018
      %2020 = vrot.lane.b32.xlu0 %v2009, 91
      %v2021 = vpop.permute.xlu0 %2020
      %2022 = vrot.lane.b32.xlu0 %v2011, 91
      %v2023 = vpop.permute.xlu0 %2022
      %2024 = vrot.lane.b32.xlu0 %v2013, 91
      %v2025 = vpop.permute.xlu0 %2024
      %vm2026 = vcmask 744448
      %v2027 = vsel %vm2026, %v2015, %v2017
      %v2028 = vsel %vm2026, %v2019, %v2021
      %v2029 = vsel %vm2026, %v2023, %v2025
      %2036 = vst [vmem:[#allocation4 + $0x2a0] sm:$0xf0] %v2027
      %2037 = vst.msk [vmem:[#allocation4 + $0x2a8] sm:$0xf0] %vm1326, %v2017
      %2038 = vst [vmem:[#allocation4 + $0x2b0] sm:$0xff] %v2028
      %2039 = vst.msk [vmem:[#allocation4 + $0x2b8] sm:$0xff] %vm1275, %v2021
      %2040 = vst [vmem:[#allocation4 + $0x2c0] sm:$0xff] %v2029
      %2041 = vst.msk [vmem:[#allocation4 + $0x2c8] sm:$0xff] %vm1275, %v2025
      %v2042 = vld [vmem:[#allocation3] sm:$0xff]
      %v2043 = vld [vmem:[#allocation3 + $0x8] sm:$0xff]
      %v2044 = vld [vmem:[#allocation3 + $0x10] sm:$0xff]
      %v2045 = vld [vmem:[#allocation3 + $0x18] sm:$0xff]
      %v2046 = vld [vmem:[#allocation3 + $0x20] sm:$0xf]
      %v2047 = vld [vmem:[#allocation3 + $0x28] sm:$0xf]
      %2054 = vrot.lane.b32.xlu0 %v2042, 80
      %v2055 = vpop.permute.xlu0 %2054
      %2056 = vrot.lane.b32.xlu0 %v2043, 80
      %v2057 = vpop.permute.xlu0 %2056
      %2058 = vrot.lane.b32.xlu0 %v2044, 80
      %v2059 = vpop.permute.xlu0 %2058
      %2060 = vrot.lane.b32.xlu0 %v2045, 80
      %v2061 = vpop.permute.xlu0 %2060
      %2062 = vrot.lane.b32.xlu0 %v2046, 80
      %v2063 = vpop.permute.xlu0 %2062
      %2064 = vrot.lane.b32.xlu0 %v2047, 80
      %v2065 = vpop.permute.xlu0 %2064
      %v2066 = vsel %vm748, %v2055, %v2057
      %v2067 = vsel %vm748, %v2059, %v2061
      %v2068 = vsel %vm748, %v2063, %v2065
      %2075 = vst [vmem:[#allocation4 + $0x2d0] sm:$0xff] %v2066
      %2076 = vst.msk [vmem:[#allocation4 + $0x2d8] sm:$0xff] %vm1275, %v2057
      %2077 = vst [vmem:[#allocation4 + $0x2e0] sm:$0xff] %v2067
      %2078 = vst.msk [vmem:[#allocation4 + $0x2e8] sm:$0xff] %vm1275, %v2061
      %2079 = vst [vmem:[#allocation4 + $0x2f0] sm:$0xf] %v2068
      %2080 = vst.msk [vmem:[#allocation4 + $0x2f8] sm:$0xf] %vm1280, %v2065
      %v2081 = vld [vmem:[#allocation3] sm:$0xff]
      %v2082 = vld [vmem:[#allocation3 + $0x8] sm:$0xff]
      %v2083 = vld [vmem:[#allocation3 + $0x10] sm:$0xff]
      %v2084 = vld [vmem:[#allocation3 + $0x18] sm:$0xff]
      %v2085 = vld [vmem:[#allocation3 + $0x20] sm:$0xf]
      %v2086 = vld [vmem:[#allocation3 + $0x28] sm:$0xf]
      %v2093 = vrot.slane %v2081, 4
      %v2094 = vrot.slane %v2082, 4
      %v2095 = vrot.slane %v2083, 4
      %v2096 = vsel %vm292, %v2093, %v2095
      %v2097 = vrot.slane %v2084, 4
      %v2098 = vsel %vm292, %v2094, %v2097
      %v2099 = vrot.slane %v2085, 4
      %v2100 = vsel %vm292, %v2095, %v2099
      %v2101 = vrot.slane %v2086, 4
      %v2102 = vsel %vm292, %v2097, %v2101
      %2103 = vrot.lane.b32.xlu0 %v2093, 79
      %v2104 = vpop.permute.xlu0 %2103
      %2105 = vrot.lane.b32.xlu0 %v2094, 79
      %v2106 = vpop.permute.xlu0 %2105
      %2107 = vrot.lane.b32.xlu0 %v2096, 79
      %v2108 = vpop.permute.xlu0 %2107
      %2109 = vrot.lane.b32.xlu0 %v2098, 79
      %v2110 = vpop.permute.xlu0 %2109
      %2111 = vrot.lane.b32.xlu0 %v2100, 79
      %v2112 = vpop.permute.xlu0 %2111
      %2113 = vrot.lane.b32.xlu0 %v2102, 79
      %v2114 = vpop.permute.xlu0 %2113
      %v2115 = vsel %vm794, %v2104, %v2106
      %v2116 = vsel %vm794, %v2108, %v2110
      %v2117 = vsel %vm794, %v2112, %v2114
      %2124 = vst [vmem:[#allocation4 + $0x2f0] sm:$0xf0] %v2115
      %2125 = vst.msk [vmem:[#allocation4 + $0x2f8] sm:$0xf0] %vm1326, %v2106
      %2126 = vst [vmem:[#allocation4 + $0x300] sm:$0xff] %v2116
      %2127 = vst.msk [vmem:[#allocation4 + $0x308] sm:$0xff] %vm1275, %v2110
      %2128 = vst [vmem:[#allocation4 + $0x310] sm:$0xff] %v2117
      %2129 = vst.msk [vmem:[#allocation4 + $0x318] sm:$0xff] %vm1275, %v2114
      %v2130 = vld [vmem:[#allocation3] sm:$0xff]
      %v2131 = vld [vmem:[#allocation3 + $0x8] sm:$0xff]
      %v2132 = vld [vmem:[#allocation3 + $0x10] sm:$0xff]
      %v2133 = vld [vmem:[#allocation3 + $0x18] sm:$0xff]
      %v2134 = vld [vmem:[#allocation3 + $0x20] sm:$0xf]
      %v2135 = vld [vmem:[#allocation3 + $0x28] sm:$0xf]
      %2142 = vrot.lane.b32.xlu0 %v2130, 78
      %v2143 = vpop.permute.xlu0 %2142
      %2144 = vrot.lane.b32.xlu0 %v2131, 78
      %v2145 = vpop.permute.xlu0 %2144
      %2146 = vrot.lane.b32.xlu0 %v2132, 78
      %v2147 = vpop.permute.xlu0 %2146
      %2148 = vrot.lane.b32.xlu0 %v2133, 78
      %v2149 = vpop.permute.xlu0 %2148
      %2150 = vrot.lane.b32.xlu0 %v2134, 78
      %v2151 = vpop.permute.xlu0 %2150
      %2152 = vrot.lane.b32.xlu0 %v2135, 78
      %v2153 = vpop.permute.xlu0 %2152
      %v2154 = vsel %vm840, %v2143, %v2145
      %v2155 = vsel %vm840, %v2147, %v2149
      %v2156 = vsel %vm840, %v2151, %v2153
      %2163 = vst [vmem:[#allocation4 + $0x320] sm:$0xff] %v2154
      %2164 = vst.msk [vmem:[#allocation4 + $0x328] sm:$0xff] %vm1275, %v2145
      %2165 = vst [vmem:[#allocation4 + $0x330] sm:$0xff] %v2155
      %2166 = vst.msk [vmem:[#allocation4 + $0x338] sm:$0xff] %vm1275, %v2149
      %2167 = vst [vmem:[#allocation4 + $0x340] sm:$0xf] %v2156
      %2168 = vst.msk [vmem:[#allocation4 + $0x348] sm:$0xf] %vm1280, %v2153
      %v2169 = vld [vmem:[#allocation3] sm:$0xff]
      %v2170 = vld [vmem:[#allocation3 + $0x8] sm:$0xff]
      %v2171 = vld [vmem:[#allocation3 + $0x10] sm:$0xff]
      %v2172 = vld [vmem:[#allocation3 + $0x18] sm:$0xff]
      %v2173 = vld [vmem:[#allocation3 + $0x20] sm:$0xf]
      %v2174 = vld [vmem:[#allocation3 + $0x28] sm:$0xf]
      %v2181 = vrot.slane %v2169, 4
      %v2182 = vrot.slane %v2170, 4
      %v2183 = vrot.slane %v2171, 4
      %v2184 = vsel %vm292, %v2181, %v2183
      %v2185 = vrot.slane %v2172, 4
      %v2186 = vsel %vm292, %v2182, %v2185
      %v2187 = vrot.slane %v2173, 4
      %v2188 = vsel %vm292, %v2183, %v2187
      %v2189 = vrot.slane %v2174, 4
      %v2190 = vsel %vm292, %v2185, %v2189
      %2191 = vrot.lane.b32.xlu0 %v2181, 77
      %v2192 = vpop.permute.xlu0 %2191
      %2193 = vrot.lane.b32.xlu0 %v2182, 77
      %v2194 = vpop.permute.xlu0 %2193
      %2195 = vrot.lane.b32.xlu0 %v2184, 77
      %v2196 = vpop.permute.xlu0 %2195
      %2197 = vrot.lane.b32.xlu0 %v2186, 77
      %v2198 = vpop.permute.xlu0 %2197
      %2199 = vrot.lane.b32.xlu0 %v2188, 77
      %v2200 = vpop.permute.xlu0 %2199
      %2201 = vrot.lane.b32.xlu0 %v2190, 77
      %v2202 = vpop.permute.xlu0 %2201
      %v2203 = vsel %vm886, %v2192, %v2194
      %v2204 = vsel %vm886, %v2196, %v2198
      %v2205 = vsel %vm886, %v2200, %v2202
      %2212 = vst [vmem:[#allocation4 + $0x340] sm:$0xf0] %v2203
      %2213 = vst.msk [vmem:[#allocation4 + $0x348] sm:$0xf0] %vm1326, %v2194
      %2214 = vst [vmem:[#allocation4 + $0x350] sm:$0xff] %v2204
      %2215 = vst.msk [vmem:[#allocation4 + $0x358] sm:$0xff] %vm1275, %v2198
      %2216 = vst [vmem:[#allocation4 + $0x360] sm:$0xff] %v2205
      %2217 = vst.msk [vmem:[#allocation4 + $0x368] sm:$0xff] %vm1275, %v2202
      %v2218 = vld [vmem:[#allocation3] sm:$0xff]
      %v2219 = vld [vmem:[#allocation3 + $0x8] sm:$0xff]
      %v2220 = vld [vmem:[#allocation3 + $0x10] sm:$0xff]
      %v2221 = vld [vmem:[#allocation3 + $0x18] sm:$0xff]
      %v2222 = vld [vmem:[#allocation3 + $0x20] sm:$0xf]
      %v2223 = vld [vmem:[#allocation3 + $0x28] sm:$0xf]
      %2230 = vrot.lane.b32.xlu0 %v2218, 76
      %v2231 = vpop.permute.xlu0 %2230
      %2232 = vrot.lane.b32.xlu0 %v2219, 76
      %v2233 = vpop.permute.xlu0 %2232
      %2234 = vrot.lane.b32.xlu0 %v2220, 76
      %v2235 = vpop.permute.xlu0 %2234
      %2236 = vrot.lane.b32.xlu0 %v2221, 76
      %v2237 = vpop.permute.xlu0 %2236
      %2238 = vrot.lane.b32.xlu0 %v2222, 76
      %v2239 = vpop.permute.xlu0 %2238
      %2240 = vrot.lane.b32.xlu0 %v2223, 76
      %v2241 = vpop.permute.xlu0 %2240
      %vm2242 = vcmask 621568
      %v2243 = vsel %vm2242, %v2231, %v2233
      %v2244 = vsel %vm2242, %v2235, %v2237
      %v2245 = vsel %vm2242, %v2239, %v2241
      %2252 = vst [vmem:[#allocation4 + $0x370] sm:$0xff] %v2243
      %2253 = vst.msk [vmem:[#allocation4 + $0x378] sm:$0xff] %vm1275, %v2233
      %2254 = vst [vmem:[#allocation4 + $0x380] sm:$0xff] %v2244
      %2255 = vst.msk [vmem:[#allocation4 + $0x388] sm:$0xff] %vm1275, %v2237
      %2256 = vst [vmem:[#allocation4 + $0x390] sm:$0xf] %v2245
      %2257 = vst.msk [vmem:[#allocation4 + $0x398] sm:$0xf] %vm1280, %v2241
      %v2258 = vld [vmem:[#allocation3] sm:$0xff]
      %v2259 = vld [vmem:[#allocation3 + $0x8] sm:$0xff]
      %v2260 = vld [vmem:[#allocation3 + $0x10] sm:$0xff]
      %v2261 = vld [vmem:[#allocation3 + $0x18] sm:$0xff]
      %v2262 = vld [vmem:[#allocation3 + $0x20] sm:$0xf]
      %v2263 = vld [vmem:[#allocation3 + $0x28] sm:$0xf]
      %v2270 = vrot.slane %v2258, 4
      %v2271 = vrot.slane %v2259, 4
      %v2272 = vrot.slane %v2260, 4
      %v2273 = vsel %vm292, %v2270, %v2272
      %v2274 = vrot.slane %v2261, 4
      %v2275 = vsel %vm292, %v2271, %v2274
      %v2276 = vrot.slane %v2262, 4
      %v2277 = vsel %vm292, %v2272, %v2276
      %v2278 = vrot.slane %v2263, 4
      %v2279 = vsel %vm292, %v2274, %v2278
      %2280 = vrot.lane.b32.xlu0 %v2270, 75
      %v2281 = vpop.permute.xlu0 %2280
      %2282 = vrot.lane.b32.xlu0 %v2271, 75
      %v2283 = vpop.permute.xlu0 %2282
      %2284 = vrot.lane.b32.xlu0 %v2273, 75
      %v2285 = vpop.permute.xlu0 %2284
      %2286 = vrot.lane.b32.xlu0 %v2275, 75
      %v2287 = vpop.permute.xlu0 %2286
      %2288 = vrot.lane.b32.xlu0 %v2277, 75
      %v2289 = vpop.permute.xlu0 %2288
      %2290 = vrot.lane.b32.xlu0 %v2279, 75
      %v2291 = vpop.permute.xlu0 %2290
      %vm2292 = vcmask 613376
      %v2293 = vsel %vm2292, %v2281, %v2283
      %v2294 = vsel %vm2292, %v2285, %v2287
      %v2295 = vsel %vm2292, %v2289, %v2291
      %2302 = vst [vmem:[#allocation4 + $0x390] sm:$0xf0] %v2293
      %2303 = vst.msk [vmem:[#allocation4 + $0x398] sm:$0xf0] %vm1326, %v2283
      %2304 = vst [vmem:[#allocation4 + $0x3a0] sm:$0xff] %v2294
      %2305 = vst.msk [vmem:[#allocation4 + $0x3a8] sm:$0xff] %vm1275, %v2287
      %2306 = vst [vmem:[#allocation4 + $0x3b0] sm:$0xff] %v2295
      %2307 = vst.msk [vmem:[#allocation4 + $0x3b8] sm:$0xff] %vm1275, %v2291
      %v2308 = vld [vmem:[%s3] sm:$0xff]
      %v2309 = vld [vmem:[%s3 + $0x8] sm:$0xff]
      %v2310 = vld [vmem:[%s3 + $0x10] sm:$0xff]
      %v2311 = vld [vmem:[%s3 + $0x18] sm:$0xff]
      %v2312 = vld [vmem:[%s3 + $0x20] sm:$0x7f]
      %v2313 = vld [vmem:[%s3 + $0x28] sm:$0x7f]
      %v2314 = vld [vmem:[%s3 + $0x30] sm:$0x7f]
      %v2315 = vld [vmem:[%s3 + $0x38] sm:$0x7f]
      %v2316 = vld [vmem:[#allocation4] sm:$0xff]
      %v2317 = vld [vmem:[#allocation4 + $0x8] sm:$0xff]
      %v2318 = vld [vmem:[#allocation4 + $0x10] sm:$0xff]
      %v2319 = vld [vmem:[#allocation4 + $0x18] sm:$0xff]
      %v2320 = vld [vmem:[#allocation4 + $0x20] sm:$0xff]
      %v2321 = vld [vmem:[#allocation4 + $0x28] sm:$0xff]
      %v2322 = vld [vmem:[#allocation4 + $0x30] sm:$0xff]
      %v2323 = vld [vmem:[#allocation4 + $0x38] sm:$0xff]
      %v2324 = vld [vmem:[#allocation4 + $0x40] sm:$0xff]
      %v2325 = vld [vmem:[#allocation4 + $0x48] sm:$0xff]
      %v2326 = vld [vmem:[#allocation4 + $0x50] sm:$0xff]
      %v2327 = vld [vmem:[#allocation4 + $0x58] sm:$0xff]
      %v2328 = vld [vmem:[#allocation4 + $0x60] sm:$0xff]
      %v2329 = vld [vmem:[#allocation4 + $0x68] sm:$0xff]
      %v2330 = vld [vmem:[#allocation4 + $0x70] sm:$0xff]
      %v2331 = vld [vmem:[#allocation4 + $0x78] sm:$0xff]
      %v2332 = vld [vmem:[#allocation4 + $0x80] sm:$0xff]
      %v2333 = vld [vmem:[#allocation4 + $0x88] sm:$0xff]
      %v2334 = vld [vmem:[#allocation4 + $0x90] sm:$0xff]
      %v2335 = vld [vmem:[#allocation4 + $0x98] sm:$0xff]
      %v2336 = vld [vmem:[#allocation4 + $0xa0] sm:$0xff]
      %v2337 = vld [vmem:[#allocation4 + $0xa8] sm:$0xff]
      %v2338 = vld [vmem:[#allocation4 + $0xb0] sm:$0xff]
      %v2339 = vld [vmem:[#allocation4 + $0xb8] sm:$0xff]
      %v2340 = vld [vmem:[#allocation4 + $0xc0] sm:$0xff]
      %v2341 = vld [vmem:[#allocation4 + $0xc8] sm:$0xff]
      %v2342 = vld [vmem:[#allocation4 + $0xd0] sm:$0xff]
      %v2343 = vld [vmem:[#allocation4 + $0xd8] sm:$0xff]
      %v2344 = vld [vmem:[#allocation4 + $0xe0] sm:$0xff]
      %v2345 = vld [vmem:[#allocation4 + $0xe8] sm:$0xff]
      %v2346 = vld [vmem:[#allocation4 + $0xf0] sm:$0xff]
      %v2347 = vld [vmem:[#allocation4 + $0xf8] sm:$0xff]
      %v2348 = vld [vmem:[#allocation4 + $0x100] sm:$0xff]
      %v2349 = vld [vmem:[#allocation4 + $0x108] sm:$0xff]
      %v2350 = vld [vmem:[#allocation4 + $0x110] sm:$0xff]
      %v2351 = vld [vmem:[#allocation4 + $0x118] sm:$0xff]
      %v2352 = vld [vmem:[#allocation4 + $0x120] sm:$0xff]
      %v2353 = vld [vmem:[#allocation4 + $0x128] sm:$0xff]
      %v2354 = vld [vmem:[#allocation4 + $0x130] sm:$0xff]
      %v2355 = vld [vmem:[#allocation4 + $0x138] sm:$0xff]
      %v2356 = vld [vmem:[#allocation4 + $0x140] sm:$0xff]
      %v2357 = vld [vmem:[#allocation4 + $0x148] sm:$0xff]
      %v2358 = vld [vmem:[#allocation4 + $0x150] sm:$0xff]
      %v2359 = vld [vmem:[#allocation4 + $0x158] sm:$0xff]
      %v2360 = vld [vmem:[#allocation4 + $0x160] sm:$0xff]
      %v2361 = vld [vmem:[#allocation4 + $0x168] sm:$0xff]
      %v2362 = vld [vmem:[#allocation4 + $0x170] sm:$0xff]
      %v2363 = vld [vmem:[#allocation4 + $0x178] sm:$0xff]
      %v2364 = vld [vmem:[#allocation4 + $0x180] sm:$0xff]
      %v2365 = vld [vmem:[#allocation4 + $0x188] sm:$0xff]
      %v2366 = vld [vmem:[#allocation4 + $0x190] sm:$0xff]
      %v2367 = vld [vmem:[#allocation4 + $0x198] sm:$0xff]
      %v2368 = vld [vmem:[#allocation4 + $0x1a0] sm:$0xff]
      %v2369 = vld [vmem:[#allocation4 + $0x1a8] sm:$0xff]
      %v2370 = vld [vmem:[#allocation4 + $0x1b0] sm:$0xff]
      %v2371 = vld [vmem:[#allocation4 + $0x1b8] sm:$0xff]
      %v2372 = vld [vmem:[#allocation4 + $0x1c0] sm:$0xff]
      %v2373 = vld [vmem:[#allocation4 + $0x1c8] sm:$0xff]
      %v2374 = vld [vmem:[#allocation4 + $0x1d0] sm:$0xff]
      %v2375 = vld [vmem:[#allocation4 + $0x1d8] sm:$0xff]
      %v2376 = vld [vmem:[#allocation4 + $0x1e0] sm:$0xff]
      %v2377 = vld [vmem:[#allocation4 + $0x1e8] sm:$0xff]
      %v2378 = vld [vmem:[#allocation4 + $0x1f0] sm:$0xff]
      %v2379 = vld [vmem:[#allocation4 + $0x1f8] sm:$0xff]
      %v2380 = vld [vmem:[#allocation4 + $0x200] sm:$0xff]
      %v2381 = vld [vmem:[#allocation4 + $0x208] sm:$0xff]
      %v2382 = vld [vmem:[#allocation4 + $0x210] sm:$0xff]
      %v2383 = vld [vmem:[#allocation4 + $0x218] sm:$0xff]
      %v2384 = vld [vmem:[#allocation4 + $0x220] sm:$0xff]
      %v2385 = vld [vmem:[#allocation4 + $0x228] sm:$0xff]
      %v2386 = vld [vmem:[#allocation4 + $0x230] sm:$0xff]
      %v2387 = vld [vmem:[#allocation4 + $0x238] sm:$0xff]
      %v2388 = vld [vmem:[#allocation4 + $0x240] sm:$0xff]
      %v2389 = vld [vmem:[#allocation4 + $0x248] sm:$0xff]
      %v2390 = vld [vmem:[#allocation4 + $0x250] sm:$0xff]
      %v2391 = vld [vmem:[#allocation4 + $0x258] sm:$0xff]
      %v2392 = vld [vmem:[#allocation4 + $0x260] sm:$0xff]
      %v2393 = vld [vmem:[#allocation4 + $0x268] sm:$0xff]
      %v2394 = vld [vmem:[#allocation4 + $0x270] sm:$0xff]
      %v2395 = vld [vmem:[#allocation4 + $0x278] sm:$0xff]
      %v2396 = vld [vmem:[#allocation4 + $0x280] sm:$0xff]
      %v2397 = vld [vmem:[#allocation4 + $0x288] sm:$0xff]
      %v2398 = vld [vmem:[#allocation4 + $0x290] sm:$0xff]
      %v2399 = vld [vmem:[#allocation4 + $0x298] sm:$0xff]
      %v2400 = vld [vmem:[#allocation4 + $0x2a0] sm:$0xff]
      %v2401 = vld [vmem:[#allocation4 + $0x2a8] sm:$0xff]
      %v2402 = vld [vmem:[#allocation4 + $0x2b0] sm:$0xff]
      %v2403 = vld [vmem:[#allocation4 + $0x2b8] sm:$0xff]
      %v2404 = vld [vmem:[#allocation4 + $0x2c0] sm:$0xff]
      %v2405 = vld [vmem:[#allocation4 + $0x2c8] sm:$0xff]
      %v2406 = vld [vmem:[#allocation4 + $0x2d0] sm:$0xff]
      %v2407 = vld [vmem:[#allocation4 + $0x2d8] sm:$0xff]
      %v2408 = vld [vmem:[#allocation4 + $0x2e0] sm:$0xff]
      %v2409 = vld [vmem:[#allocation4 + $0x2e8] sm:$0xff]
      %v2410 = vld [vmem:[#allocation4 + $0x2f0] sm:$0xff]
      %v2411 = vld [vmem:[#allocation4 + $0x2f8] sm:$0xff]
      %v2412 = vld [vmem:[#allocation4 + $0x300] sm:$0xff]
      %v2413 = vld [vmem:[#allocation4 + $0x308] sm:$0xff]
      %v2414 = vld [vmem:[#allocation4 + $0x310] sm:$0xff]
      %v2415 = vld [vmem:[#allocation4 + $0x318] sm:$0xff]
      %v2416 = vld [vmem:[#allocation4 + $0x320] sm:$0xff]
      %v2417 = vld [vmem:[#allocation4 + $0x328] sm:$0xff]
      %v2418 = vld [vmem:[#allocation4 + $0x330] sm:$0xff]
      %v2419 = vld [vmem:[#allocation4 + $0x338] sm:$0xff]
      %v2420 = vld [vmem:[#allocation4 + $0x340] sm:$0xff]
      %v2421 = vld [vmem:[#allocation4 + $0x348] sm:$0xff]
      %v2422 = vld [vmem:[#allocation4 + $0x350] sm:$0xff]
      %v2423 = vld [vmem:[#allocation4 + $0x358] sm:$0xff]
      %v2424 = vld [vmem:[#allocation4 + $0x360] sm:$0xff]
      %v2425 = vld [vmem:[#allocation4 + $0x368] sm:$0xff]
      %v2426 = vld [vmem:[#allocation4 + $0x370] sm:$0xff]
      %v2427 = vld [vmem:[#allocation4 + $0x378] sm:$0xff]
      %v2428 = vld [vmem:[#allocation4 + $0x380] sm:$0xff]
      %v2429 = vld [vmem:[#allocation4 + $0x388] sm:$0xff]
      %v2430 = vld [vmem:[#allocation4 + $0x390] sm:$0xff]
      %v2431 = vld [vmem:[#allocation4 + $0x398] sm:$0xff]
      %v2432 = vld [vmem:[#allocation4 + $0x3a0] sm:$0xff]
      %v2433 = vld [vmem:[#allocation4 + $0x3a8] sm:$0xff]
      %v2434 = vld [vmem:[#allocation4 + $0x3b0] sm:$0xff]
      %v2435 = vld [vmem:[#allocation4 + $0x3b8] sm:$0xff]
      %v2436 = vld [vmem:[%s4] sm:$0xff]
      %v2437 = vld [vmem:[%s4 + $0x8] sm:$0x7f]
      %2439 = vset.pattern.permute.xlu0 0
      %2440 = vperm.xlu0 %2439, %v2436
      %v2441 = vpop.permute.xlu0 %2440
      %2444 = vset.pattern.permute.xlu0 0
      %2445 = vperm.xlu0 %2444, %v2437
      %v2446 = vpop.permute.xlu0 %2445
      %v2449 = vsel %vm573, %v2311, 0
      %v2452 = vsel %vm573, %v2315, 0
      %2454 = vmatpush.msra.mxu0 %v2346
      %2455 = vmatpush.msra.mxu0 %v2344
      %2456 = vmatpush.msra.mxu0 %v2342
      %2457 = vmatpush.msra.mxu0 %v2340
      %2458 = vmatpush.msra.mxu0 %v2338
      %2459 = vmatpush.msra.mxu0 %v2336
      %2460 = vmatpush.msra.mxu0 %v2334
      %2461 = vmatpush.msra.mxu0 %v2332
      %2462 = vmatpush.msra.mxu0 %v2330
      %2463 = vmatpush.msra.mxu0 %v2328
      %2464 = vmatpush.msra.mxu0 %v2326
      %2465 = vmatpush.msra.mxu0 %v2324
      %2466 = vmatpush.msra.mxu0 %v2322
      %2467 = vmatpush.msra.mxu0 %v2320
      %2468 = vmatpush.msra.mxu0 %v2318
      %2469 = vmatpush.msra.mxu0 %v2316
      %2470 = vmatmul.f32.gmra.mxu0 %v2308
      %v2471 = vpop.f32.mrf.mxu0
      %v2472 = vadd.f32 %v2441, %v2471
      %2473 = vmatmul.f32.gmra.mxu0 %v2312
      %v2474 = vpop.f32.mrf.mxu0
      %v2475 = vadd.f32 %v2446, %v2474
      %2476 = vdwg.mxu0
      %2477 = vmatpush.msra.mxu0 %v2378
      %2478 = vmatpush.msra.mxu0 %v2376
      %2479 = vmatpush.msra.mxu0 %v2374
      %2480 = vmatpush.msra.mxu0 %v2372
      %2481 = vmatpush.msra.mxu0 %v2370
      %2482 = vmatpush.msra.mxu0 %v2368
      %2483 = vmatpush.msra.mxu0 %v2366
      %2484 = vmatpush.msra.mxu0 %v2364
      %2485 = vmatpush.msra.mxu0 %v2362
      %2486 = vmatpush.msra.mxu0 %v2360
      %2487 = vmatpush.msra.mxu0 %v2358
      %2488 = vmatpush.msra.mxu0 %v2356
      %2489 = vmatpush.msra.mxu0 %v2354
      %2490 = vmatpush.msra.mxu0 %v2352
      %2491 = vmatpush.msra.mxu0 %v2350
      %2492 = vmatpush.msra.mxu0 %v2348
      %2493 = vmatmul.f32.gmra.mxu0 %v2309
      %v2494 = vpop.f32.mrf.mxu0
      %v2495 = vadd.f32 %v2472, %v2494
      %2496 = vmatmul.f32.gmra.mxu0 %v2313
      %v2497 = vpop.f32.mrf.mxu0
      %v2498 = vadd.f32 %v2475, %v2497
      %2499 = vdwg.mxu0
      %2500 = vmatpush.msra.mxu0 %v2410
      %2501 = vmatpush.msra.mxu0 %v2408
      %2502 = vmatpush.msra.mxu0 %v2406
      %2503 = vmatpush.msra.mxu0 %v2404
      %2504 = vmatpush.msra.mxu0 %v2402
      %2505 = vmatpush.msra.mxu0 %v2400
      %2506 = vmatpush.msra.mxu0 %v2398
      %2507 = vmatpush.msra.mxu0 %v2396
      %2508 = vmatpush.msra.mxu0 %v2394
      %2509 = vmatpush.msra.mxu0 %v2392
      %2510 = vmatpush.msra.mxu0 %v2390
      %2511 = vmatpush.msra.mxu0 %v2388
      %2512 = vmatpush.msra.mxu0 %v2386
      %2513 = vmatpush.msra.mxu0 %v2384
      %2514 = vmatpush.msra.mxu0 %v2382
      %2515 = vmatpush.msra.mxu0 %v2380
      %2516 = vmatmul.f32.gmra.mxu0 %v2310
      %v2517 = vpop.f32.mrf.mxu0
      %v2518 = vadd.f32 %v2495, %v2517
      %2519 = vmatmul.f32.gmra.mxu0 %v2314
      %v2520 = vpop.f32.mrf.mxu0
      %v2521 = vadd.f32 %v2498, %v2520
      %2522 = vdwg.mxu0
      %2523 = vmatpush.msra.mxu0 0.0
      %2524 = vmatpush.msra.mxu0 0.0
      %2525 = vmatpush.msra.mxu0 0.0
      %2526 = vmatpush.msra.mxu0 0.0
      %2527 = vmatpush.msra.mxu0 %v2434
      %2528 = vmatpush.msra.mxu0 %v2432
      %2529 = vmatpush.msra.mxu0 %v2430
      %2530 = vmatpush.msra.mxu0 %v2428
      %2531 = vmatpush.msra.mxu0 %v2426
      %2532 = vmatpush.msra.mxu0 %v2424
      %2533 = vmatpush.msra.mxu0 %v2422
      %2534 = vmatpush.msra.mxu0 %v2420
      %2535 = vmatpush.msra.mxu0 %v2418
      %2536 = vmatpush.msra.mxu0 %v2416
      %2537 = vmatpush.msra.mxu0 %v2414
      %2538 = vmatpush.msra.mxu0 %v2412
      %2539 = vmatmul.f32.gmra.mxu0 %v2449
      %v2540 = vpop.f32.mrf.mxu0
      %v2541 = vadd.f32 %v2518, %v2540
      %2542 = vmatmul.f32.gmra.mxu0 %v2452
      %v2543 = vpop.f32.mrf.mxu0
      %v2544 = vadd.f32 %v2521, %v2543
      %2545 = vdwg.mxu0
      %2546 = vmatpush.msra.mxu0 %v2347
      %2547 = vmatpush.msra.mxu0 %v2345
      %2548 = vmatpush.msra.mxu0 %v2343
      %2549 = vmatpush.msra.mxu0 %v2341
      %2550 = vmatpush.msra.mxu0 %v2339
      %2551 = vmatpush.msra.mxu0 %v2337
      %2552 = vmatpush.msra.mxu0 %v2335
      %2553 = vmatpush.msra.mxu0 %v2333
      %2554 = vmatpush.msra.mxu0 %v2331
      %2555 = vmatpush.msra.mxu0 %v2329
      %2556 = vmatpush.msra.mxu0 %v2327
      %2557 = vmatpush.msra.mxu0 %v2325
      %2558 = vmatpush.msra.mxu0 %v2323
      %2559 = vmatpush.msra.mxu0 %v2321
      %2560 = vmatpush.msra.mxu0 %v2319
      %2561 = vmatpush.msra.mxu0 %v2317
      %2562 = vmatmul.f32.gmra.mxu0 %v2308
      %v2563 = vpop.f32.mrf.mxu0
      %v2564 = vadd.f32 %v2441, %v2563
      %2565 = vmatmul.f32.gmra.mxu0 %v2312
      %v2566 = vpop.f32.mrf.mxu0
      %v2567 = vadd.f32 %v2446, %v2566
      %2568 = vdwg.mxu0
      %2569 = vmatpush.msra.mxu0 %v2379
      %2570 = vmatpush.msra.mxu0 %v2377
      %2571 = vmatpush.msra.mxu0 %v2375
      %2572 = vmatpush.msra.mxu0 %v2373
      %2573 = vmatpush.msra.mxu0 %v2371
      %2574 = vmatpush.msra.mxu0 %v2369
      %2575 = vmatpush.msra.mxu0 %v2367
      %2576 = vmatpush.msra.mxu0 %v2365
      %2577 = vmatpush.msra.mxu0 %v2363
      %2578 = vmatpush.msra.mxu0 %v2361
      %2579 = vmatpush.msra.mxu0 %v2359
      %2580 = vmatpush.msra.mxu0 %v2357
      %2581 = vmatpush.msra.mxu0 %v2355
      %2582 = vmatpush.msra.mxu0 %v2353
      %2583 = vmatpush.msra.mxu0 %v2351
      %2584 = vmatpush.msra.mxu0 %v2349
      %2585 = vmatmul.f32.gmra.mxu0 %v2309
      %v2586 = vpop.f32.mrf.mxu0
      %v2587 = vadd.f32 %v2564, %v2586
      %2588 = vmatmul.f32.gmra.mxu0 %v2313
      %v2589 = vpop.f32.mrf.mxu0
      %v2590 = vadd.f32 %v2567, %v2589
      %2591 = vdwg.mxu0
      %2592 = vmatpush.msra.mxu0 %v2411
      %2593 = vmatpush.msra.mxu0 %v2409
      %2594 = vmatpush.msra.mxu0 %v2407
      %2595 = vmatpush.msra.mxu0 %v2405
      %2596 = vmatpush.msra.mxu0 %v2403
      %2597 = vmatpush.msra.mxu0 %v2401
      %2598 = vmatpush.msra.mxu0 %v2399
      %2599 = vmatpush.msra.mxu0 %v2397
      %2600 = vmatpush.msra.mxu0 %v2395
      %2601 = vmatpush.msra.mxu0 %v2393
      %2602 = vmatpush.msra.mxu0 %v2391
      %2603 = vmatpush.msra.mxu0 %v2389
      %2604 = vmatpush.msra.mxu0 %v2387
      %2605 = vmatpush.msra.mxu0 %v2385
      %2606 = vmatpush.msra.mxu0 %v2383
      %2607 = vmatpush.msra.mxu0 %v2381
      %2608 = vmatmul.f32.gmra.mxu0 %v2310
      %v2609 = vpop.f32.mrf.mxu0
      %v2610 = vadd.f32 %v2587, %v2609
      %2611 = vmatmul.f32.gmra.mxu0 %v2314
      %v2612 = vpop.f32.mrf.mxu0
      %v2613 = vadd.f32 %v2590, %v2612
      %2614 = vdwg.mxu0
      %2615 = vmatpush.msra.mxu0 0.0
      %2616 = vmatpush.msra.mxu0 0.0
      %2617 = vmatpush.msra.mxu0 0.0
      %2618 = vmatpush.msra.mxu0 0.0
      %2619 = vmatpush.msra.mxu0 %v2435
      %2620 = vmatpush.msra.mxu0 %v2433
      %2621 = vmatpush.msra.mxu0 %v2431
      %2622 = vmatpush.msra.mxu0 %v2429
      %2623 = vmatpush.msra.mxu0 %v2427
      %2624 = vmatpush.msra.mxu0 %v2425
      %2625 = vmatpush.msra.mxu0 %v2423
      %2626 = vmatpush.msra.mxu0 %v2421
      %2627 = vmatpush.msra.mxu0 %v2419
      %2628 = vmatpush.msra.mxu0 %v2417
      %2629 = vmatpush.msra.mxu0 %v2415
      %2630 = vmatpush.msra.mxu0 %v2413
      %2631 = vmatmul.f32.gmra.mxu0 %v2449
      %v2632 = vpop.f32.mrf.mxu0
      %v2633 = vadd.f32 %v2610, %v2632
      %2634 = vmatmul.f32.gmra.mxu0 %v2452
      %v2635 = vpop.f32.mrf.mxu0
      %v2636 = vadd.f32 %v2613, %v2635
      %2637 = vdwg.mxu0
      %2638 = vst [vmem:[%s224] sm:$0xff] %v2541
      %2639 = vst.msk [vmem:[%s224 + $0x8] sm:$0xff] %vm1275, %v2633
      %2640 = vst [vmem:[%s224 + $0x10] sm:$0x7f] %v2544
      %vm2641 = vcmask 129024
      %2642 = vst.msk [vmem:[%s224 + $0x18] sm:$0x7f] %vm2641, %v2636
      %p2643 = scmp.lt.s32.totalorder %s16, 1
      %s2644 = scalar_select %p2643, %s16, 1
      %s2645 = smul.addr %s2644, 4
      %s2646 = smul.addr %s2645, 8
      %s2647 = scalar_lea.vmem %s5, %s2646
      // Predicated region
      $region41: #{tpu_custom_call.1} parent=39 // pred_check
        %p2648 = pneg %p144
      $region42: #{tpu_custom_call.1} parent=39 // pred_check_branch
        %2650 = sbr.rel (%p2648) target = $region44
      $region43: #{tpu_custom_call.1} parent=39 // pred_region
        _
      $region44: #{tpu_custom_call.1} parent=39 // pred_fallthru
        _
    $region40: #{tpu_custom_call.1} parent=5 // pred_fallthru
      _
    %p2651 = scmp.le.s32.totalorder 2, %s11
    // Predicated region
    $region45: #{tpu_custom_call.1} parent=5 // pred_check
      %p2652 = pneg %p2651
    $region46: #{tpu_custom_call.1} parent=5 // pred_check_branch
      %2654 = sbr.rel (%p2652) target = $region48
    $region47: #{tpu_custom_call.1} parent=5 // pred_region
      %s2655 = ssub.s32 %s11, 2
      // Predicated region
      $region49: #{tpu_custom_call.1} parent=47 // pred_check
        %p2656 = pneg %p150
      $region50: #{tpu_custom_call.1} parent=47 // pred_check_branch
        %2658 = sbr.rel (%p2656) target = $region52
      $region51: #{tpu_custom_call.1} parent=47 // pred_region
        %p2659 = scmp.lt.s32.totalorder %s17, 1
        %s2660 = scalar_select %p2659, %s17, 1
        %s2661 = smul.addr %s2660, 4
        %s2662 = smul.addr %s2661, 8
        %s2663 = scalar_lea.vmem %s5, %s2662
      $region52: #{tpu_custom_call.1} parent=47 // pred_fallthru
        _
    $region48: #{tpu_custom_call.1} parent=5 // pred_fallthru
      _
  $region6: #{tpu_custom_call.1} parent=0 // loop_footer
    %s15 = sadd.s32 1, %s11
  $region7: #{tpu_custom_call.1} parent=0 // loop_footer_branch
    %10 = sbr.rel target = $region3
  $region8: #{tpu_custom_call.1} parent=0 // loop_exit
    _

</llo_original>
